<compile_context>
chip_gen: v6e
topology: v6e:2x2x1
jax: 0.10.0
libtpu: 0.0.40
codegen_flags: <defaults>
</compile_context>

<pallas_src>
import jax
import jax.numpy as jnp
from jax import lax
from jax.experimental import pallas as pl
from jax.experimental.pallas import tpu as pltpu

LEAKY_SLOPE = 0.01   # nn.LeakyReLU default negative_slope
BN_EPS = 1e-5        # nn.BatchNorm1d default eps


def _bn_leaky(h, gamma, beta):
    """Training-mode BatchNorm1d (biased batch variance) fused with LeakyReLU.

    h: (B, F) f32, gamma/beta: (1, F) f32. Fused per-feature affine: the big
    (B, F) activation is touched by a single scale+shift pass; rsqrt goes to
    the EUP. One-pass variance is clamped at 0: E[h^2]-mean^2 can go slightly
    negative from f32 cancellation and would NaN the whole batch via rsqrt.
    """
    mean = jnp.mean(h, axis=0, keepdims=True)                        # (1, F)
    var = jnp.mean(h * h, axis=0, keepdims=True) - mean * mean       # one-pass
    var = jnp.maximum(var, 0.0)                                      # clamp (free VPU op)
    scale = gamma * lax.rsqrt(var + BN_EPS)                          # (1, F)
    shift = beta - mean * scale                                      # (1, F)
    y = h * scale + shift
    return jnp.where(y > 0, y, LEAKY_SLOPE * y)


def encoder_kernel(x_ref, w1_ref, w2_ref, w3_ref, vec_ref, o_ref):
    # x arrives as f32; cast to bf16 in-kernel (VPU is idle, avoids a separate
    # wrapper-side cast op and the extra HBM write+read it implies).
    x = x_ref[...].astype(jnp.bfloat16)              # (B, ze) bf16

    vec = vec_ref[...]                               # (5, 512) f32, one small load
    g1, be1 = vec[0:1, :], vec[1:2, :]
    g2, be2 = vec[2:3, :], vec[3:4, :]
    b3 = vec[4:5, :]

    # layer 1: linear (bias dropped: cancelled by BN) -> BN(batch stats) -> LeakyReLU
    h = jnp.dot(x, w1_ref[...], preferred_element_type=jnp.float32)
    h = _bn_leaky(h, g1, be1)

    # layer 2
    h = jnp.dot(h.astype(jnp.bfloat16), w2_ref[...],
                preferred_element_type=jnp.float32)
    h = _bn_leaky(h, g2, be2)

    # layer 3: plain linear with bias
    out = jnp.dot(h.astype(jnp.bfloat16), w3_ref[...],
                  preferred_element_type=jnp.float32) + b3
    o_ref[...] = out.astype(o_ref.dtype)


def encoder_forward(x, params):
    """x: (B, ...) f32 -> (B, 512) f32. Matches Encoder.forward in training mode.

    Requires B > 1 (training-mode BatchNorm batch statistics).
    """
    B = x.shape[0]
    x2d = x.reshape(B, -1)                           # stays f32; cast happens in-kernel
    ze = x2d.shape[1]

    w1, w2, w3 = params["w1"], params["w2"], params["w3"]
    vec = params["vec"]                              # packed once at init: (5, 512) f32

    # Rough VMEM footprint (single block, no grid -> no double-buffering of
    # inputs), with 2x headroom for compiler scratch. Raising the scoped limit
    # matters on v5e (16 MiB default) once B grows; cap at 32 MiB so the same
    # number is safe on v7x's 64 MiB physical VMEM.
    est_bytes = (
        x2d.size * 4                                  # x f32
        + B * 512 * 4                                 # out f32
        + (w1.size + w2.size + w3.size) * 2           # bf16 weights
        + vec.size * 4                                # packed per-feature vectors
        + 3 * B * 512 * 4                             # live f32 activations
    )
    vmem_limit = int(min(max(2 * est_bytes, 16 * 1024 * 1024), 32 * 1024 * 1024))

    vmem = pl.BlockSpec(memory_space=pltpu.VMEM)
    out = pl.pallas_call(
        encoder_kernel,
        out_shape=jax.ShapeDtypeStruct((B, 512), jnp.float32),
        in_specs=[vmem] * 5,
        out_specs=vmem,
        compiler_params=pltpu.CompilerParams(vmem_limit_bytes=vmem_limit),
    )(x2d, w1, w2, w3, vec)
    return out.reshape(-1, 512)


def init_params(key, ze):
    """Deterministic init matching PyTorch layer shapes.

    nn.Linear(in, out).weight is (out, in); we store the transpose (in, out) in
    bf16 so the kernel computes x @ W directly on the MXU. b1/b2 are omitted on
    purpose: they are exactly cancelled by the training-mode BN mean
    subtraction. The five remaining per-feature vectors are packed into a
    single (5, 512) f32 operand ONCE here, so the forward pays a single small
    DMA and no per-call concat.
    """
    k1, k2, k3, k4 = jax.random.split(key, 4)

    def lin_w(k, fan_in, fan_out):
        bound = 1.0 / (fan_in ** 0.5)
        return jax.random.uniform(k, (fan_in, fan_out), jnp.float32, -bound, bound)

    w1 = lin_w(k1, ze, 512)
    w2 = lin_w(k2, 512, 512)
    w3 = lin_w(k3, 512, 512)
    b3 = jax.random.uniform(k4, (512,), jnp.float32,
                            -1.0 / (512 ** 0.5), 1.0 / (512 ** 0.5))

    g1 = jnp.ones((512,), jnp.float32)
    be1 = jnp.zeros((512,), jnp.float32)
    g2 = jnp.ones((512,), jnp.float32)
    be2 = jnp.zeros((512,), jnp.float32)

    # Packed kernel operand (the kernel consumes only vec + w1/w2/w3).
    vec = jnp.stack([g1, be1, g2, be2, b3], axis=0)   # (5, 512) f32

    return {
        "w1": w1.astype(jnp.bfloat16),
        "w2": w2.astype(jnp.bfloat16),
        "w3": w3.astype(jnp.bfloat16),
        "vec": vec,
        # f32 copies kept only for the pure-JAX reference.
        "g1": g1, "be1": be1, "g2": g2, "be2": be2, "b3": b3,
    }


def encoder_reference(x, params):
    """Pure-JAX f32 reference with the exact PyTorch BN/LeakyReLU math."""
    def bn(h, g, b):
        m = jnp.mean(h, axis=0, keepdims=True)
        v = jnp.mean((h - m) ** 2, axis=0, keepdims=True)
        return (h - m) * lax.rsqrt(v + BN_EPS) * g + b

    def lrelu(h):
        return jnp.where(h > 0, h, LEAKY_SLOPE * h)

    x = x.reshape(x.shape[0], -1)
    h = lrelu(bn(x @ params["w1"].astype(jnp.float32), params["g1"], params["be1"]))
    h = lrelu(bn(h @ params["w2"].astype(jnp.float32), params["g2"], params["be2"]))
    return h @ params["w3"].astype(jnp.float32) + params["b3"]


if __name__ == "__main__":
    key = jax.random.PRNGKey(0)
    kx, kp = jax.random.split(key)

    B, ZE = 8, 256          # BatchNorm1d in training mode needs batch > 1
    x = jax.random.normal(kx, (B, ZE), jnp.float32)
    params = init_params(kp, ZE)

    out = encoder_forward(x, params)
    out = jax.block_until_ready(out)
    assert out.shape == (B, 512), out.shape
    assert bool(jnp.all(jnp.isfinite(out))), "non-finite values in kernel output"

    ref = encoder_reference(x, params)
    max_err = float(jnp.max(jnp.abs(out - ref)))
    assert jnp.allclose(out, ref, atol=5e-2, rtol=5e-2), max_err

    print("KERNEL_OK")
</pallas_src>

<mosaic_0001>
module attributes {stable_mosaic.version = 11 : i64} {
  func.func @encoder_kernel(%arg0: memref<8x256xf32, #tpu.memory_space<vmem>>, %arg1: memref<256x512xbf16, #tpu.memory_space<vmem>>, %arg2: memref<512x512xbf16, #tpu.memory_space<vmem>>, %arg3: memref<512x512xbf16, #tpu.memory_space<vmem>>, %arg4: memref<5x512xf32, #tpu.memory_space<vmem>>, %arg5: memref<8x512xf32, #tpu.memory_space<vmem>>) attributes {dimension_semantics = [], scalar_prefetch = 0 : i64, scratch_operands = 0 : i64, tpu.core_type = #tpu.core_type<tc>} {
    %c0 = arith.constant 0 : index
    %c0_0 = arith.constant 0 : index
    %0 = vector.load %arg0[%c0, %c0_0] : memref<8x256xf32, #tpu.memory_space<vmem>>, vector<8x256xf32>
    %1 = arith.truncf %0 : vector<8x256xf32> to vector<8x256xbf16>
    %c0_1 = arith.constant 0 : index
    %c0_2 = arith.constant 0 : index
    %2 = vector.load %arg4[%c0_1, %c0_2] : memref<5x512xf32, #tpu.memory_space<vmem>>, vector<5x512xf32>
    %3 = vector.extract_strided_slice %2 {offsets = [0, 0], sizes = [1, 512], strides = [1, 1]} : vector<5x512xf32> to vector<1x512xf32>
    %4 = vector.extract_strided_slice %2 {offsets = [1, 0], sizes = [1, 512], strides = [1, 1]} : vector<5x512xf32> to vector<1x512xf32>
    %5 = vector.extract_strided_slice %2 {offsets = [2, 0], sizes = [1, 512], strides = [1, 1]} : vector<5x512xf32> to vector<1x512xf32>
    %6 = vector.extract_strided_slice %2 {offsets = [3, 0], sizes = [1, 512], strides = [1, 1]} : vector<5x512xf32> to vector<1x512xf32>
    %7 = vector.extract_strided_slice %2 {offsets = [4, 0], sizes = [1, 512], strides = [1, 1]} : vector<5x512xf32> to vector<1x512xf32>
    %c0_3 = arith.constant 0 : index
    %c0_4 = arith.constant 0 : index
    %8 = vector.load %arg1[%c0_3, %c0_4] : memref<256x512xbf16, #tpu.memory_space<vmem>>, vector<256x512xbf16>
    %cst = arith.constant dense<0.000000e+00> : vector<8x512xf32>
    %9 = tpu.matmul %1, %8, %cst {dimension_numbers = #tpu.dot_dimension_numbers<[1], [0], [0], [1], [0, 0, 1, 1], [], []>} : vector<8x256xbf16>, vector<256x512xbf16>, vector<8x512xf32> -> vector<8x512xf32>
    %cst_5 = arith.constant dense<0.000000e+00> : vector<512xf32>
    %10 = vector.multi_reduction <add>, %9, %cst_5 [0] : vector<8x512xf32> to vector<512xf32>
    %11 = vector.shape_cast %10 : vector<512xf32> to vector<1x512xf32>
    %cst_6 = arith.constant 8.000000e+00 : f32
    %12 = vector.broadcast %cst_6 : f32 to vector<1x512xf32>
    %13 = arith.divf %11, %12 : vector<1x512xf32>
    %14 = arith.mulf %9, %9 : vector<8x512xf32>
    %cst_7 = arith.constant dense<0.000000e+00> : vector<512xf32>
    %15 = vector.multi_reduction <add>, %14, %cst_7 [0] : vector<8x512xf32> to vector<512xf32>
    %16 = vector.shape_cast %15 : vector<512xf32> to vector<1x512xf32>
    %cst_8 = arith.constant 8.000000e+00 : f32
    %17 = vector.broadcast %cst_8 : f32 to vector<1x512xf32>
    %18 = arith.divf %16, %17 : vector<1x512xf32>
    %19 = arith.mulf %13, %13 : vector<1x512xf32>
    %20 = arith.subf %18, %19 : vector<1x512xf32>
    %cst_9 = arith.constant 0.000000e+00 : f32
    %21 = vector.broadcast %cst_9 : f32 to vector<1x512xf32>
    %22 = arith.maximumf %20, %21 : vector<1x512xf32>
    %cst_10 = arith.constant 9.99999974E-6 : f32
    %23 = vector.broadcast %cst_10 : f32 to vector<1x512xf32>
    %24 = arith.addf %22, %23 : vector<1x512xf32>
    %25 = math.rsqrt %24 : vector<1x512xf32>
    %26 = arith.mulf %3, %25 : vector<1x512xf32>
    %27 = arith.mulf %13, %26 : vector<1x512xf32>
    %28 = arith.subf %4, %27 : vector<1x512xf32>
    %29 = vector.broadcast %26 : vector<1x512xf32> to vector<8x512xf32>
    %30 = arith.mulf %9, %29 : vector<8x512xf32>
    %31 = vector.broadcast %28 : vector<1x512xf32> to vector<8x512xf32>
    %32 = arith.addf %30, %31 : vector<8x512xf32>
    %cst_11 = arith.constant 0.000000e+00 : f32
    %33 = vector.broadcast %cst_11 : f32 to vector<8x512xf32>
    %34 = arith.cmpf ogt, %32, %33 : vector<8x512xf32>
    %cst_12 = arith.constant 0.00999999977 : f32
    %35 = vector.broadcast %cst_12 : f32 to vector<8x512xf32>
    %36 = arith.mulf %35, %32 : vector<8x512xf32>
    %37 = arith.select %34, %32, %36 : vector<8x512xi1>, vector<8x512xf32>
    %38 = arith.truncf %37 : vector<8x512xf32> to vector<8x512xbf16>
    %c0_13 = arith.constant 0 : index
    %c0_14 = arith.constant 0 : index
    %39 = vector.load %arg2[%c0_13, %c0_14] : memref<512x512xbf16, #tpu.memory_space<vmem>>, vector<512x512xbf16>
    %cst_15 = arith.constant dense<0.000000e+00> : vector<8x512xf32>
    %40 = tpu.matmul %38, %39, %cst_15 {dimension_numbers = #tpu.dot_dimension_numbers<[1], [0], [0], [1], [0, 0, 1, 1], [], []>} : vector<8x512xbf16>, vector<512x512xbf16>, vector<8x512xf32> -> vector<8x512xf32>
    %cst_16 = arith.constant dense<0.000000e+00> : vector<512xf32>
    %41 = vector.multi_reduction <add>, %40, %cst_16 [0] : vector<8x512xf32> to vector<512xf32>
    %42 = vector.shape_cast %41 : vector<512xf32> to vector<1x512xf32>
    %cst_17 = arith.constant 8.000000e+00 : f32
    %43 = vector.broadcast %cst_17 : f32 to vector<1x512xf32>
    %44 = arith.divf %42, %43 : vector<1x512xf32>
    %45 = arith.mulf %40, %40 : vector<8x512xf32>
    %cst_18 = arith.constant dense<0.000000e+00> : vector<512xf32>
    %46 = vector.multi_reduction <add>, %45, %cst_18 [0] : vector<8x512xf32> to vector<512xf32>
    %47 = vector.shape_cast %46 : vector<512xf32> to vector<1x512xf32>
    %cst_19 = arith.constant 8.000000e+00 : f32
    %48 = vector.broadcast %cst_19 : f32 to vector<1x512xf32>
    %49 = arith.divf %47, %48 : vector<1x512xf32>
    %50 = arith.mulf %44, %44 : vector<1x512xf32>
    %51 = arith.subf %49, %50 : vector<1x512xf32>
    %cst_20 = arith.constant 0.000000e+00 : f32
    %52 = vector.broadcast %cst_20 : f32 to vector<1x512xf32>
    %53 = arith.maximumf %51, %52 : vector<1x512xf32>
    %cst_21 = arith.constant 9.99999974E-6 : f32
    %54 = vector.broadcast %cst_21 : f32 to vector<1x512xf32>
    %55 = arith.addf %53, %54 : vector<1x512xf32>
    %56 = math.rsqrt %55 : vector<1x512xf32>
    %57 = arith.mulf %5, %56 : vector<1x512xf32>
    %58 = arith.mulf %44, %57 : vector<1x512xf32>
    %59 = arith.subf %6, %58 : vector<1x512xf32>
    %60 = vector.broadcast %57 : vector<1x512xf32> to vector<8x512xf32>
    %61 = arith.mulf %40, %60 : vector<8x512xf32>
    %62 = vector.broadcast %59 : vector<1x512xf32> to vector<8x512xf32>
    %63 = arith.addf %61, %62 : vector<8x512xf32>
    %cst_22 = arith.constant 0.000000e+00 : f32
    %64 = vector.broadcast %cst_22 : f32 to vector<8x512xf32>
    %65 = arith.cmpf ogt, %63, %64 : vector<8x512xf32>
    %cst_23 = arith.constant 0.00999999977 : f32
    %66 = vector.broadcast %cst_23 : f32 to vector<8x512xf32>
    %67 = arith.mulf %66, %63 : vector<8x512xf32>
    %68 = arith.select %65, %63, %67 : vector<8x512xi1>, vector<8x512xf32>
    %69 = arith.truncf %68 : vector<8x512xf32> to vector<8x512xbf16>
    %c0_24 = arith.constant 0 : index
    %c0_25 = arith.constant 0 : index
    %70 = vector.load %arg3[%c0_24, %c0_25] : memref<512x512xbf16, #tpu.memory_space<vmem>>, vector<512x512xbf16>
    %cst_26 = arith.constant dense<0.000000e+00> : vector<8x512xf32>
    %71 = tpu.matmul %69, %70, %cst_26 {dimension_numbers = #tpu.dot_dimension_numbers<[1], [0], [0], [1], [0, 0, 1, 1], [], []>} : vector<8x512xbf16>, vector<512x512xbf16>, vector<8x512xf32> -> vector<8x512xf32>
    %72 = vector.broadcast %7 : vector<1x512xf32> to vector<8x512xf32>
    %73 = arith.addf %71, %72 : vector<8x512xf32>
    %c0_27 = arith.constant 0 : index
    %c0_28 = arith.constant 0 : index
    %74 = vector.load %arg5[%c0_27, %c0_28] : memref<8x512xf32, #tpu.memory_space<vmem>>, vector<8x512xf32>
    tpu.vector_store %arg5[%c0_27, %c0_28], %73 {strides = array<i32>} : memref<8x512xf32, #tpu.memory_space<vmem>>, vector<8x512xf32>,
    return
  }
}

</mosaic_0001>

<llo_original>
// kernel: tpu_custom_call.1
$region0: #{tpu_custom_call.1}
  #allocation0 [shape = 'u32[]', space=smem, size = 0x4, offset = 0x4, fixed_abs, tag = 'smem constant byte address 0x4 - core index']
  #allocation1 [shape = 'u32[144,128]{1,0:T(1,128)}', space=vmem, size = 0x12000, scoped, tag = 'internal scratch']
  %s0 = inlined_call_operand.hbm [shape: f32[8,256], index: 0, kind: input, shape index: {}]
  %s1 = inlined_call_operand.hbm [shape: bf16[256,512], index: 1, kind: input, shape index: {}]
  %s2 = inlined_call_operand.hbm [shape: bf16[512,512], index: 2, kind: input, shape index: {}]
  %s3 = inlined_call_operand.hbm [shape: bf16[512,512], index: 3, kind: input, shape index: {}]
  %s4 = inlined_call_operand.hbm [shape: f32[5,512], index: 4, kind: input, shape index: {}]
  %s5 = inlined_call_operand.hbm [shape: f32[8,512], index: 5, kind: output, shape index: {}]
  %s6 = sld [smem:[#allocation0]]
  $region50: #{tpu_custom_call.1} parent=0
    _
  %s8 = ssub.s32 1, %s6
  %s9 = scalar_select 0, %s8, %s6
  $region1: #{tpu_custom_call.1} parent=0
    #allocation2 [shape = 'u8[8192]{0}', space=vmem, size = 0x2000, scoped, tag = 'input window, operand 0, single buffered']
    #allocation3 [shape = 's32[1]{0}', space=sflag, size = 0x4, scoped, tag = 'scoped memory for tpu_custom_call.1']
    #allocation4 [shape = 's32[1]{0}', space=sflag, size = 0x4, scoped, tag = 'scoped memory for tpu_custom_call.1']
    #allocation5 [shape = 'u8[262144]{0}', space=vmem, size = 0x40000, scoped, tag = 'input window, operand 1, single buffered']
    #allocation6 [shape = 's32[1]{0}', space=sflag, size = 0x4, scoped, tag = 'scoped memory for tpu_custom_call.1']
    #allocation7 [shape = 'u8[524288]{0}', space=vmem, size = 0x80000, scoped, tag = 'input window, operand 2, single buffered']
    #allocation8 [shape = 'u8[524288]{0}', space=vmem, size = 0x80000, scoped, tag = 'input window, operand 3, single buffered']
    #allocation9 [shape = 's32[1]{0}', space=sflag, size = 0x4, scoped, tag = 'scoped memory for tpu_custom_call.1']
    #allocation10 [shape = 'u8[16384]{0}', space=vmem, size = 0x4000, scoped, tag = 'input window, operand 4, single buffered']
    #allocation11 [shape = 'u8[16384]{0}', space=vmem, size = 0x4000, scoped, tag = 'output window, operand 0, single buffered']
    %10 = vsyncpa [#allocation3], 0
    %11 = vsyncpa [#allocation6], 0
    %12 = vsyncpa [#allocation9], 0
    %13 = vsyncpa [#allocation4], 0
    // Predicated region
    $region2: #{tpu_custom_call.1} parent=1 // pred_check
      _
    $region3: #{tpu_custom_call.1} parent=1 // pred_check_branch
      %15 = sbr.rel (0) target = $region5
    $region4: #{tpu_custom_call.1} parent=1 // pred_region
      %s17 = ssub.s32 256, 256
      %18 = vsyncadd [#allocation3], %s17
      %s20 = sshll.u32 [#allocation2], 4
      %s21 = int_to_ptr.vmem [resolvable:$true] %s20
      %23 = dma.hbm_to_vmem [thread:$0]  %s0, 256, %s21, [#allocation3]
    $region5: #{tpu_custom_call.1} parent=1 // pred_fallthru
      _
    // Predicated region
    $region6: #{tpu_custom_call.1} parent=1 // pred_check
      _
    $region7: #{tpu_custom_call.1} parent=1 // pred_check_branch
      %25 = sbr.rel (0) target = $region9
    $region8: #{tpu_custom_call.1} parent=1 // pred_region
      %s27 = ssub.s32 8192, 8192
      %28 = vsyncadd [#allocation6], %s27
      %s29 = sshll.u32 [#allocation5], 4
      %s30 = int_to_ptr.vmem [resolvable:$true] %s29
      %35 = dma.hbm_to_vmem [thread:$0]  %s1, 8192, %s30, [#allocation6], 256, 256, 16
    $region9: #{tpu_custom_call.1} parent=1 // pred_fallthru
      _
    // Predicated region
    $region10: #{tpu_custom_call.1} parent=1 // pred_check
      _
    $region11: #{tpu_custom_call.1} parent=1 // pred_check_branch
      %37 = sbr.rel (0) target = $region13
    $region12: #{tpu_custom_call.1} parent=1 // pred_region
      %s39 = ssub.s32 16384, 16384
      %40 = vsyncadd [#allocation6], %s39
      %s41 = sshll.u32 [#allocation7], 4
      %s42 = int_to_ptr.vmem [resolvable:$true] %s41
      %47 = dma.hbm_to_vmem [thread:$0]  %s2, 16384, %s42, [#allocation6], 256, 256, 16
    $region13: #{tpu_custom_call.1} parent=1 // pred_fallthru
      _
    // Predicated region
    $region14: #{tpu_custom_call.1} parent=1 // pred_check
      _
    $region15: #{tpu_custom_call.1} parent=1 // pred_check_branch
      %49 = sbr.rel (0) target = $region17
    $region16: #{tpu_custom_call.1} parent=1 // pred_region
      %s51 = ssub.s32 16384, 16384
      %52 = vsyncadd [#allocation9], %s51
      %s53 = sshll.u32 [#allocation8], 4
      %s54 = int_to_ptr.vmem [resolvable:$true] %s53
      %59 = dma.hbm_to_vmem [thread:$0]  %s3, 16384, %s54, [#allocation9], 256, 256, 16
    $region17: #{tpu_custom_call.1} parent=1 // pred_fallthru
      _
    // Predicated region
    $region18: #{tpu_custom_call.1} parent=1 // pred_check
      _
    $region19: #{tpu_custom_call.1} parent=1 // pred_check_branch
      %61 = sbr.rel (0) target = $region21
    $region20: #{tpu_custom_call.1} parent=1 // pred_region
      %s63 = ssub.s32 512, 512
      %64 = vsyncadd [#allocation9], %s63
      %s66 = sshll.u32 [#allocation10], 4
      %s67 = int_to_ptr.vmem [resolvable:$true] %s66
      %69 = dma.hbm_to_vmem [thread:$0]  %s4, 512, %s67, [#allocation9]
    $region21: #{tpu_custom_call.1} parent=1 // pred_fallthru
      _
    // Predicated region
    $region22: #{tpu_custom_call.1} parent=1 // pred_check
      _
    $region23: #{tpu_custom_call.1} parent=1 // pred_check_branch
      %71 = sbr.rel (0) target = $region25
    $region24: #{tpu_custom_call.1} parent=1 // pred_region
      %72 = dma.done [#allocation3], 256
    $region25: #{tpu_custom_call.1} parent=1 // pred_fallthru
      _
    // Predicated region
    $region26: #{tpu_custom_call.1} parent=1 // pred_check
      _
    $region27: #{tpu_custom_call.1} parent=1 // pred_check_branch
      %74 = sbr.rel (0) target = $region29
    $region28: #{tpu_custom_call.1} parent=1 // pred_region
      %75 = dma.done [#allocation6], 8192
    $region29: #{tpu_custom_call.1} parent=1 // pred_fallthru
      _
    // Predicated region
    $region30: #{tpu_custom_call.1} parent=1 // pred_check
      _
    $region31: #{tpu_custom_call.1} parent=1 // pred_check_branch
      %77 = sbr.rel (0) target = $region33
    $region32: #{tpu_custom_call.1} parent=1 // pred_region
      %78 = dma.done [#allocation6], 16384
    $region33: #{tpu_custom_call.1} parent=1 // pred_fallthru
      _
    // Predicated region
    $region34: #{tpu_custom_call.1} parent=1 // pred_check
      _
    $region35: #{tpu_custom_call.1} parent=1 // pred_check_branch
      %80 = sbr.rel (0) target = $region37
    $region36: #{tpu_custom_call.1} parent=1 // pred_region
      %81 = dma.done [#allocation9], 16384
    $region37: #{tpu_custom_call.1} parent=1 // pred_fallthru
      _
    // Predicated region
    $region38: #{tpu_custom_call.1} parent=1 // pred_check
      _
    $region39: #{tpu_custom_call.1} parent=1 // pred_check_branch
      %83 = sbr.rel (0) target = $region41
    $region40: #{tpu_custom_call.1} parent=1 // pred_region
      %84 = dma.done [#allocation9], 512
    $region41: #{tpu_custom_call.1} parent=1 // pred_fallthru
      _
    %v85 = vld [vmem:[#allocation2] sm:$0xff]
    %v86 = vld [vmem:[#allocation2 + $0x8] sm:$0xff]
    %v87 = vpack.c.bf16 %v85, %v85
    %v88 = vpack.c.bf16 %v86, %v86
    %v89 = vld [vmem:[#allocation10] sm:$0x1f]
    %v90 = vld [vmem:[#allocation10 + $0x8] sm:$0x1f]
    %v91 = vld [vmem:[#allocation10 + $0x10] sm:$0x1f]
    %v92 = vld [vmem:[#allocation10 + $0x18] sm:$0x1f]
    %v93 = vld [vmem:[#allocation5] sm:$0xff]
    %v94 = vld [vmem:[#allocation5 + $0x8] sm:$0xff]
    %v95 = vld [vmem:[#allocation5 + $0x10] sm:$0xff]
    %v96 = vld [vmem:[#allocation5 + $0x18] sm:$0xff]
    %v97 = vld [vmem:[#allocation5 + $0x20] sm:$0xff]
    %v98 = vld [vmem:[#allocation5 + $0x28] sm:$0xff]
    %v99 = vld [vmem:[#allocation5 + $0x30] sm:$0xff]
    %v100 = vld [vmem:[#allocation5 + $0x38] sm:$0xff]
    %v101 = vld [vmem:[#allocation5 + $0x40] sm:$0xff]
    %v102 = vld [vmem:[#allocation5 + $0x48] sm:$0xff]
    %v103 = vld [vmem:[#allocation5 + $0x50] sm:$0xff]
    %v104 = vld [vmem:[#allocation5 + $0x58] sm:$0xff]
    %v105 = vld [vmem:[#allocation5 + $0x60] sm:$0xff]
    %v106 = vld [vmem:[#allocation5 + $0x68] sm:$0xff]
    %v107 = vld [vmem:[#allocation5 + $0x70] sm:$0xff]
    %v108 = vld [vmem:[#allocation5 + $0x78] sm:$0xff]
    %v109 = vld [vmem:[#allocation5 + $0x80] sm:$0xff]
    %v110 = vld [vmem:[#allocation5 + $0x88] sm:$0xff]
    %v111 = vld [vmem:[#allocation5 + $0x90] sm:$0xff]
    %v112 = vld [vmem:[#allocation5 + $0x98] sm:$0xff]
    %v113 = vld [vmem:[#allocation5 + $0xa0] sm:$0xff]
    %v114 = vld [vmem:[#allocation5 + $0xa8] sm:$0xff]
    %v115 = vld [vmem:[#allocation5 + $0xb0] sm:$0xff]
    %v116 = vld [vmem:[#allocation5 + $0xb8] sm:$0xff]
    %v117 = vld [vmem:[#allocation5 + $0xc0] sm:$0xff]
    %v118 = vld [vmem:[#allocation5 + $0xc8] sm:$0xff]
    %v119 = vld [vmem:[#allocation5 + $0xd0] sm:$0xff]
    %v120 = vld [vmem:[#allocation5 + $0xd8] sm:$0xff]
    %v121 = vld [vmem:[#allocation5 + $0xe0] sm:$0xff]
    %v122 = vld [vmem:[#allocation5 + $0xe8] sm:$0xff]
    %v123 = vld [vmem:[#allocation5 + $0xf0] sm:$0xff]
    %v124 = vld [vmem:[#allocation5 + $0xf8] sm:$0xff]
    %v125 = vld [vmem:[#allocation5 + $0x100] sm:$0xff]
    %v126 = vld [vmem:[#allocation5 + $0x108] sm:$0xff]
    %v127 = vld [vmem:[#allocation5 + $0x110] sm:$0xff]
    %v128 = vld [vmem:[#allocation5 + $0x118] sm:$0xff]
    %v129 = vld [vmem:[#allocation5 + $0x120] sm:$0xff]
    %v130 = vld [vmem:[#allocation5 + $0x128] sm:$0xff]
    %v131 = vld [vmem:[#allocation5 + $0x130] sm:$0xff]
    %v132 = vld [vmem:[#allocation5 + $0x138] sm:$0xff]
    %v133 = vld [vmem:[#allocation5 + $0x140] sm:$0xff]
    %v134 = vld [vmem:[#allocation5 + $0x148] sm:$0xff]
    %v135 = vld [vmem:[#allocation5 + $0x150] sm:$0xff]
    %v136 = vld [vmem:[#allocation5 + $0x158] sm:$0xff]
    %v137 = vld [vmem:[#allocation5 + $0x160] sm:$0xff]
    %v138 = vld [vmem:[#allocation5 + $0x168] sm:$0xff]
    %v139 = vld [vmem:[#allocation5 + $0x170] sm:$0xff]
    %v140 = vld [vmem:[#allocation5 + $0x178] sm:$0xff]
    %v141 = vld [vmem:[#allocation5 + $0x180] sm:$0xff]
    %v142 = vld [vmem:[#allocation5 + $0x188] sm:$0xff]
    %v143 = vld [vmem:[#allocation5 + $0x190] sm:$0xff]
    %v144 = vld [vmem:[#allocation5 + $0x198] sm:$0xff]
    %v145 = vld [vmem:[#allocation5 + $0x1a0] sm:$0xff]
    %v146 = vld [vmem:[#allocation5 + $0x1a8] sm:$0xff]
    %v147 = vld [vmem:[#allocation5 + $0x1b0] sm:$0xff]
    %v148 = vld [vmem:[#allocation5 + $0x1b8] sm:$0xff]
    %v149 = vld [vmem:[#allocation5 + $0x1c0] sm:$0xff]
    %v150 = vld [vmem:[#allocation5 + $0x1c8] sm:$0xff]
    %v151 = vld [vmem:[#allocation5 + $0x1d0] sm:$0xff]
    %v152 = vld [vmem:[#allocation5 + $0x1d8] sm:$0xff]
    %v153 = vld [vmem:[#allocation5 + $0x1e0] sm:$0xff]
    %v154 = vld [vmem:[#allocation5 + $0x1e8] sm:$0xff]
    %v155 = vld [vmem:[#allocation5 + $0x1f0] sm:$0xff]
    %v156 = vld [vmem:[#allocation5 + $0x1f8] sm:$0xff]
    %v221 = vunpack.c.l.b16 %v93
    %v222 = vunpack.c.h.b16 %v93
    %v223 = vunpack.c.l.b16 %v94
    %v224 = vunpack.c.h.b16 %v94
    %v225 = vunpack.c.l.b16 %v95
    %v226 = vunpack.c.h.b16 %v95
    %v227 = vunpack.c.l.b16 %v96
    %v228 = vunpack.c.h.b16 %v96
    %v229 = vunpack.c.l.b16 %v97
    %v230 = vunpack.c.h.b16 %v97
    %v231 = vunpack.c.l.b16 %v98
    %v232 = vunpack.c.h.b16 %v98
    %v233 = vunpack.c.l.b16 %v99
    %v234 = vunpack.c.h.b16 %v99
    %v235 = vunpack.c.l.b16 %v100
    %v236 = vunpack.c.h.b16 %v100
    %v237 = vunpack.c.l.b16 %v101
    %v238 = vunpack.c.h.b16 %v101
    %v239 = vunpack.c.l.b16 %v102
    %v240 = vunpack.c.h.b16 %v102
    %v241 = vunpack.c.l.b16 %v103
    %v242 = vunpack.c.h.b16 %v103
    %v243 = vunpack.c.l.b16 %v104
    %v244 = vunpack.c.h.b16 %v104
    %v245 = vunpack.c.l.b16 %v105
    %v246 = vunpack.c.h.b16 %v105
    %v247 = vunpack.c.l.b16 %v106
    %v248 = vunpack.c.h.b16 %v106
    %v249 = vunpack.c.l.b16 %v107
    %v250 = vunpack.c.h.b16 %v107
    %v251 = vunpack.c.l.b16 %v108
    %v252 = vunpack.c.h.b16 %v108
    %v253 = vunpack.c.l.b16 %v109
    %v254 = vunpack.c.h.b16 %v109
    %v255 = vunpack.c.l.b16 %v110
    %v256 = vunpack.c.h.b16 %v110
    %v257 = vunpack.c.l.b16 %v111
    %v258 = vunpack.c.h.b16 %v111
    %v259 = vunpack.c.l.b16 %v112
    %v260 = vunpack.c.h.b16 %v112
    %v261 = vunpack.c.l.b16 %v113
    %v262 = vunpack.c.h.b16 %v113
    %v263 = vunpack.c.l.b16 %v114
    %v264 = vunpack.c.h.b16 %v114
    %v265 = vunpack.c.l.b16 %v115
    %v266 = vunpack.c.h.b16 %v115
    %v267 = vunpack.c.l.b16 %v116
    %v268 = vunpack.c.h.b16 %v116
    %v269 = vunpack.c.l.b16 %v117
    %v270 = vunpack.c.h.b16 %v117
    %v271 = vunpack.c.l.b16 %v118
    %v272 = vunpack.c.h.b16 %v118
    %v273 = vunpack.c.l.b16 %v119
    %v274 = vunpack.c.h.b16 %v119
    %v275 = vunpack.c.l.b16 %v120
    %v276 = vunpack.c.h.b16 %v120
    %v277 = vunpack.c.l.b16 %v121
    %v278 = vunpack.c.h.b16 %v121
    %v279 = vunpack.c.l.b16 %v122
    %v280 = vunpack.c.h.b16 %v122
    %v281 = vunpack.c.l.b16 %v123
    %v282 = vunpack.c.h.b16 %v123
    %v283 = vunpack.c.l.b16 %v124
    %v284 = vunpack.c.h.b16 %v124
    %v285 = vunpack.c.l.b16 %v125
    %v286 = vunpack.c.h.b16 %v125
    %v287 = vunpack.c.l.b16 %v126
    %v288 = vunpack.c.h.b16 %v126
    %v289 = vunpack.c.l.b16 %v127
    %v290 = vunpack.c.h.b16 %v127
    %v291 = vunpack.c.l.b16 %v128
    %v292 = vunpack.c.h.b16 %v128
    %v293 = vunpack.c.l.b16 %v129
    %v294 = vunpack.c.h.b16 %v129
    %v295 = vunpack.c.l.b16 %v130
    %v296 = vunpack.c.h.b16 %v130
    %v297 = vunpack.c.l.b16 %v131
    %v298 = vunpack.c.h.b16 %v131
    %v299 = vunpack.c.l.b16 %v132
    %v300 = vunpack.c.h.b16 %v132
    %v301 = vunpack.c.l.b16 %v133
    %v302 = vunpack.c.h.b16 %v133
    %v303 = vunpack.c.l.b16 %v134
    %v304 = vunpack.c.h.b16 %v134
    %v305 = vunpack.c.l.b16 %v135
    %v306 = vunpack.c.h.b16 %v135
    %v307 = vunpack.c.l.b16 %v136
    %v308 = vunpack.c.h.b16 %v136
    %v309 = vunpack.c.l.b16 %v137
    %v310 = vunpack.c.h.b16 %v137
    %v311 = vunpack.c.l.b16 %v138
    %v312 = vunpack.c.h.b16 %v138
    %v313 = vunpack.c.l.b16 %v139
    %v314 = vunpack.c.h.b16 %v139
    %v315 = vunpack.c.l.b16 %v140
    %v316 = vunpack.c.h.b16 %v140
    %v317 = vunpack.c.l.b16 %v141
    %v318 = vunpack.c.h.b16 %v141
    %v319 = vunpack.c.l.b16 %v142
    %v320 = vunpack.c.h.b16 %v142
    %v321 = vunpack.c.l.b16 %v143
    %v322 = vunpack.c.h.b16 %v143
    %v323 = vunpack.c.l.b16 %v144
    %v324 = vunpack.c.h.b16 %v144
    %v325 = vunpack.c.l.b16 %v145
    %v326 = vunpack.c.h.b16 %v145
    %v327 = vunpack.c.l.b16 %v146
    %v328 = vunpack.c.h.b16 %v146
    %v329 = vunpack.c.l.b16 %v147
    %v330 = vunpack.c.h.b16 %v147
    %v331 = vunpack.c.l.b16 %v148
    %v332 = vunpack.c.h.b16 %v148
    %v333 = vunpack.c.l.b16 %v149
    %v334 = vunpack.c.h.b16 %v149
    %v335 = vunpack.c.l.b16 %v150
    %v336 = vunpack.c.h.b16 %v150
    %v337 = vunpack.c.l.b16 %v151
    %v338 = vunpack.c.h.b16 %v151
    %v339 = vunpack.c.l.b16 %v152
    %v340 = vunpack.c.h.b16 %v152
    %v341 = vunpack.c.l.b16 %v153
    %v342 = vunpack.c.h.b16 %v153
    %v343 = vunpack.c.l.b16 %v154
    %v344 = vunpack.c.h.b16 %v154
    %v345 = vunpack.c.l.b16 %v155
    %v346 = vunpack.c.h.b16 %v155
    %v347 = vunpack.c.l.b16 %v156
    %v348 = vunpack.c.h.b16 %v156
    %v349 = vpack.c.b16 %v225, %v221
    %v350 = vpack.c.b16 %v226, %v222
    %v351 = vpack.c.b16 %v227, %v223
    %v352 = vpack.c.b16 %v228, %v224
    %v353 = vpack.c.b16 %v233, %v229
    %v354 = vpack.c.b16 %v234, %v230
    %v355 = vpack.c.b16 %v235, %v231
    %v356 = vpack.c.b16 %v236, %v232
    %v357 = vpack.c.b16 %v241, %v237
    %v358 = vpack.c.b16 %v242, %v238
    %v359 = vpack.c.b16 %v243, %v239
    %v360 = vpack.c.b16 %v244, %v240
    %v361 = vpack.c.b16 %v249, %v245
    %v362 = vpack.c.b16 %v250, %v246
    %v363 = vpack.c.b16 %v251, %v247
    %v364 = vpack.c.b16 %v252, %v248
    %v365 = vpack.c.b16 %v257, %v253
    %v366 = vpack.c.b16 %v258, %v254
    %v367 = vpack.c.b16 %v259, %v255
    %v368 = vpack.c.b16 %v260, %v256
    %v369 = vpack.c.b16 %v265, %v261
    %v370 = vpack.c.b16 %v266, %v262
    %v371 = vpack.c.b16 %v267, %v263
    %v372 = vpack.c.b16 %v268, %v264
    %v373 = vpack.c.b16 %v273, %v269
    %v374 = vpack.c.b16 %v274, %v270
    %v375 = vpack.c.b16 %v275, %v271
    %v376 = vpack.c.b16 %v276, %v272
    %v377 = vpack.c.b16 %v281, %v277
    %v378 = vpack.c.b16 %v282, %v278
    %v379 = vpack.c.b16 %v283, %v279
    %v380 = vpack.c.b16 %v284, %v280
    %v381 = vpack.c.b16 %v289, %v285
    %v382 = vpack.c.b16 %v290, %v286
    %v383 = vpack.c.b16 %v291, %v287
    %v384 = vpack.c.b16 %v292, %v288
    %v385 = vpack.c.b16 %v297, %v293
    %v386 = vpack.c.b16 %v298, %v294
    %v387 = vpack.c.b16 %v299, %v295
    %v388 = vpack.c.b16 %v300, %v296
    %v389 = vpack.c.b16 %v305, %v301
    %v390 = vpack.c.b16 %v306, %v302
    %v391 = vpack.c.b16 %v307, %v303
    %v392 = vpack.c.b16 %v308, %v304
    %v393 = vpack.c.b16 %v313, %v309
    %v394 = vpack.c.b16 %v314, %v310
    %v395 = vpack.c.b16 %v315, %v311
    %v396 = vpack.c.b16 %v316, %v312
    %v397 = vpack.c.b16 %v321, %v317
    %v398 = vpack.c.b16 %v322, %v318
    %v399 = vpack.c.b16 %v323, %v319
    %v400 = vpack.c.b16 %v324, %v320
    %v401 = vpack.c.b16 %v329, %v325
    %v402 = vpack.c.b16 %v330, %v326
    %v403 = vpack.c.b16 %v331, %v327
    %v404 = vpack.c.b16 %v332, %v328
    %v405 = vpack.c.b16 %v337, %v333
    %v406 = vpack.c.b16 %v338, %v334
    %v407 = vpack.c.b16 %v339, %v335
    %v408 = vpack.c.b16 %v340, %v336
    %v409 = vpack.c.b16 %v345, %v341
    %v410 = vpack.c.b16 %v346, %v342
    %v411 = vpack.c.b16 %v347, %v343
    %v412 = vpack.c.b16 %v348, %v344
    %477 = vmatprep.subr.bf16.mxu0 %v378
    %478 = vmatpush1.bf16.msra.mxu0 %v377
    %479 = vmatprep.subr.bf16.mxu0 %v374
    %480 = vmatpush1.bf16.msra.mxu0 %v373
    %481 = vmatprep.subr.bf16.mxu0 %v370
    %482 = vmatpush1.bf16.msra.mxu0 %v369
    %483 = vmatprep.subr.bf16.mxu0 %v366
    %484 = vmatpush1.bf16.msra.mxu0 %v365
    %485 = vmatprep.subr.bf16.mxu0 %v362
    %486 = vmatpush1.bf16.msra.mxu0 %v361
    %487 = vmatprep.subr.bf16.mxu0 %v358
    %488 = vmatpush1.bf16.msra.mxu0 %v357
    %489 = vmatprep.subr.bf16.mxu0 %v354
    %490 = vmatpush1.bf16.msra.mxu0 %v353
    %491 = vmatprep.subr.bf16.mxu0 %v350
    %492 = vmatpush1.bf16.msra.mxu0 %v349
    %493 = vmatprep.subr.bf16.mxu0 %v410
    %494 = vmatpush2.bf16.msra.mxu0 %v409
    %495 = vmatprep.subr.bf16.mxu0 %v406
    %496 = vmatpush2.bf16.msra.mxu0 %v405
    %497 = vmatprep.subr.bf16.mxu0 %v402
    %498 = vmatpush2.bf16.msra.mxu0 %v401
    %499 = vmatprep.subr.bf16.mxu0 %v398
    %500 = vmatpush2.bf16.msra.mxu0 %v397
    %501 = vmatprep.subr.bf16.mxu0 %v394
    %502 = vmatpush2.bf16.msra.mxu0 %v393
    %503 = vmatprep.subr.bf16.mxu0 %v390
    %504 = vmatpush2.bf16.msra.mxu0 %v389
    %505 = vmatprep.subr.bf16.mxu0 %v386
    %506 = vmatpush2.bf16.msra.mxu0 %v385
    %507 = vmatprep.subr.bf16.mxu0 %v382
    %508 = vmatpush2.bf16.msra.mxu0 %v381
    %509 = vmatprep.mubr.bf16.mxu0 %v88
    %510 = vmatmul.mubr.bf16.gmra.mxu0 %v87
    %v511 = vpop.f32.mrf.mxu0
    %v512 = vadd.f32 0.0, %v511
    %v513 = vpop.f32.mrf.mxu0
    %v514 = vadd.f32 0.0, %v513
    %v515 = vpop.f32.mrf.mxu0
    %v516 = vpop.f32.mrf.mxu0
    %517 = vdwg.mxu0
    %518 = vmatprep.subr.bf16.mxu0 %v380
    %519 = vmatpush1.bf16.msra.mxu0 %v379
    %520 = vmatprep.subr.bf16.mxu0 %v376
    %521 = vmatpush1.bf16.msra.mxu0 %v375
    %522 = vmatprep.subr.bf16.mxu0 %v372
    %523 = vmatpush1.bf16.msra.mxu0 %v371
    %524 = vmatprep.subr.bf16.mxu0 %v368
    %525 = vmatpush1.bf16.msra.mxu0 %v367
    %526 = vmatprep.subr.bf16.mxu0 %v364
    %527 = vmatpush1.bf16.msra.mxu0 %v363
    %528 = vmatprep.subr.bf16.mxu0 %v360
    %529 = vmatpush1.bf16.msra.mxu0 %v359
    %530 = vmatprep.subr.bf16.mxu0 %v356
    %531 = vmatpush1.bf16.msra.mxu0 %v355
    %532 = vmatprep.subr.bf16.mxu0 %v352
    %533 = vmatpush1.bf16.msra.mxu0 %v351
    %534 = vmatprep.subr.bf16.mxu0 %v412
    %535 = vmatpush2.bf16.msra.mxu0 %v411
    %536 = vmatprep.subr.bf16.mxu0 %v408
    %537 = vmatpush2.bf16.msra.mxu0 %v407
    %538 = vmatprep.subr.bf16.mxu0 %v404
    %539 = vmatpush2.bf16.msra.mxu0 %v403
    %540 = vmatprep.subr.bf16.mxu0 %v400
    %541 = vmatpush2.bf16.msra.mxu0 %v399
    %542 = vmatprep.subr.bf16.mxu0 %v396
    %543 = vmatpush2.bf16.msra.mxu0 %v395
    %544 = vmatprep.subr.bf16.mxu0 %v392
    %545 = vmatpush2.bf16.msra.mxu0 %v391
    %546 = vmatprep.subr.bf16.mxu0 %v388
    %547 = vmatpush2.bf16.msra.mxu0 %v387
    %548 = vmatprep.subr.bf16.mxu0 %v384
    %549 = vmatpush2.bf16.msra.mxu0 %v383
    %550 = vmatprep.mubr.bf16.mxu0 %v88
    %551 = vmatmul.mubr.bf16.gmra.mxu0 %v87
    %v552 = vpop.f32.mrf.mxu0
    %v553 = vadd.f32 0.0, %v552
    %v554 = vpop.f32.mrf.mxu0
    %v555 = vadd.f32 0.0, %v554
    %v556 = vpop.f32.mrf.mxu0
    %v557 = vpop.f32.mrf.mxu0
    %558 = vdwg.mxu0
    %v559 = vrot.slane %v512, 4
    %v560 = vadd.f32 %v512, %v559
    %v561 = vrot.slane %v560, 2
    %v562 = vadd.f32 %v560, %v561
    %v563 = vrot.slane %v562, 1
    %v564 = vadd.f32 %v562, %v563
    %v565 = vrot.slane %v514, 4
    %v566 = vadd.f32 %v514, %v565
    %v567 = vrot.slane %v566, 2
    %v568 = vadd.f32 %v566, %v567
    %v569 = vrot.slane %v568, 1
    %v570 = vadd.f32 %v568, %v569
    %v571 = vrot.slane %v553, 4
    %v572 = vadd.f32 %v553, %v571
    %v573 = vrot.slane %v572, 2
    %v574 = vadd.f32 %v572, %v573
    %v575 = vrot.slane %v574, 1
    %v576 = vadd.f32 %v574, %v575
    %v577 = vrot.slane %v555, 4
    %v578 = vadd.f32 %v555, %v577
    %v579 = vrot.slane %v578, 2
    %v580 = vadd.f32 %v578, %v579
    %v581 = vrot.slane %v580, 1
    %v582 = vadd.f32 %v580, %v581
    %v583 = vrcp.pop 8.0
    %v584 = vmul.f32 %v564, %v583
    %v585 = vmul.f32 %v570, %v583
    %v586 = vmul.f32 %v576, %v583
    %v587 = vmul.f32 %v582, %v583
    %v588 = vmul.f32 %v512, %v512
    %v589 = vmul.f32 %v514, %v514
    %v590 = vmul.f32 %v553, %v553
    %v591 = vmul.f32 %v555, %v555
    %v592 = vrot.slane %v588, 4
    %v593 = vadd.f32 %v588, %v592
    %v594 = vrot.slane %v593, 2
    %v595 = vadd.f32 %v593, %v594
    %v596 = vrot.slane %v595, 1
    %v597 = vadd.f32 %v595, %v596
    %v598 = vrot.slane %v589, 4
    %v599 = vadd.f32 %v589, %v598
    %v600 = vrot.slane %v599, 2
    %v601 = vadd.f32 %v599, %v600
    %v602 = vrot.slane %v601, 1
    %v603 = vadd.f32 %v601, %v602
    %v604 = vrot.slane %v590, 4
    %v605 = vadd.f32 %v590, %v604
    %v606 = vrot.slane %v605, 2
    %v607 = vadd.f32 %v605, %v606
    %v608 = vrot.slane %v607, 1
    %v609 = vadd.f32 %v607, %v608
    %v610 = vrot.slane %v591, 4
    %v611 = vadd.f32 %v591, %v610
    %v612 = vrot.slane %v611, 2
    %v613 = vadd.f32 %v611, %v612
    %v614 = vrot.slane %v613, 1
    %v615 = vadd.f32 %v613, %v614
    %v616 = vmul.f32 %v597, %v583
    %v617 = vmul.f32 %v603, %v583
    %v618 = vmul.f32 %v609, %v583
    %v619 = vmul.f32 %v615, %v583
    %v620 = vmul.f32 %v584, %v584
    %v621 = vmul.f32 %v585, %v585
    %v622 = vmul.f32 %v586, %v586
    %v623 = vmul.f32 %v587, %v587
    %v624 = vsub.f32 %v616, %v620
    %v625 = vsub.f32 %v617, %v621
    %v626 = vsub.f32 %v618, %v622
    %v627 = vsub.f32 %v619, %v623
    %v628 = vmax.f32 %v624, 0.0
    %v629 = vmax.f32 %v625, 0.0
    %v630 = vmax.f32 %v626, 0.0
    %v631 = vmax.f32 %v627, 0.0
    %v632 = vadd.f32 %v628, 1e-05
    %v633 = vadd.f32 %v629, 1e-05
    %v634 = vadd.f32 %v630, 1e-05
    %v635 = vadd.f32 %v631, 1e-05
    %v636 = vrsqrt.pop %v632
    %v637 = vrsqrt.pop %v633
    %v638 = vrsqrt.pop %v634
    %v639 = vrsqrt.pop %v635
    %v640 = vmul.f32 %v89, %v636
    %v641 = vmul.f32 %v90, %v637
    %v642 = vmul.f32 %v91, %v638
    %v643 = vmul.f32 %v92, %v639
    %v644 = vmul.f32 %v584, %v640
    %v645 = vmul.f32 %v585, %v641
    %v646 = vmul.f32 %v586, %v642
    %v647 = vmul.f32 %v587, %v643
    %v652 = vrot.slane %v644, 7
    %v653 = vrot.slane %v645, 7
    %v654 = vrot.slane %v646, 7
    %v655 = vrot.slane %v647, 7
    %v660 = vsub.f32 %v89, %v652
    %v661 = vsub.f32 %v90, %v653
    %v662 = vsub.f32 %v91, %v654
    %v663 = vsub.f32 %v92, %v655
    %v664 = vlaneseq
    %v665 = vshrl.u32 %v664, 7
    %v666 = vsub.s32 0, %v665
    %v667 = vrot.slane %v640, %v666
    %v668 = vlaneseq
    %v669 = vshrl.u32 %v668, 7
    %v670 = vsub.s32 0, %v669
    %v671 = vrot.slane %v641, %v670
    %v672 = vlaneseq
    %v673 = vshrl.u32 %v672, 7
    %v674 = vsub.s32 0, %v673
    %v675 = vrot.slane %v642, %v674
    %v676 = vlaneseq
    %v677 = vshrl.u32 %v676, 7
    %v678 = vsub.s32 0, %v677
    %v679 = vrot.slane %v643, %v678
    %v680 = vmul.f32 %v512, %v667
    %v681 = vmul.f32 %v514, %v671
    %v682 = vmul.f32 %v553, %v675
    %v683 = vmul.f32 %v555, %v679
    %v684 = vlaneseq
    %v685 = vshrl.u32 %v684, 7
    %v686 = vsub.s32 1, %v685
    %v687 = vrot.slane %v660, %v686
    %v688 = vlaneseq
    %v689 = vshrl.u32 %v688, 7
    %v690 = vsub.s32 1, %v689
    %v691 = vrot.slane %v661, %v690
    %v692 = vlaneseq
    %v693 = vshrl.u32 %v692, 7
    %v694 = vsub.s32 1, %v693
    %v695 = vrot.slane %v662, %v694
    %v696 = vlaneseq
    %v697 = vshrl.u32 %v696, 7
    %v698 = vsub.s32 1, %v697
    %v699 = vrot.slane %v663, %v698
    %v700 = vadd.f32 %v680, %v687
    %v701 = vadd.f32 %v681, %v691
    %v702 = vadd.f32 %v682, %v695
    %v703 = vadd.f32 %v683, %v699
    %vm704 = vcmp.gt.f32.partialorder %v700, 0.0
    %vm705 = vcmp.gt.f32.partialorder %v701, 0.0
    %vm706 = vcmp.gt.f32.partialorder %v702, 0.0
    %vm707 = vcmp.gt.f32.partialorder %v703, 0.0
    %v708 = vmul.f32 %v700, 0.01
    %v709 = vmul.f32 %v701, 0.01
    %v710 = vmul.f32 %v702, 0.01
    %v711 = vmul.f32 %v703, 0.01
    %v712 = vsel %vm704, %v700, %v708
    %v713 = vsel %vm705, %v701, %v709
    %v714 = vsel %vm706, %v702, %v710
    %v715 = vsel %vm707, %v703, %v711
    %v716 = vpack.c.bf16 %v712, %v712
    %v717 = vpack.c.bf16 %v713, %v713
    %v718 = vpack.c.bf16 %v714, %v714
    %v719 = vpack.c.bf16 %v715, %v715
    %v720 = vld [vmem:[#allocation7] sm:$0xff]
    %v721 = vld [vmem:[#allocation7 + $0x8] sm:$0xff]
    %v722 = vld [vmem:[#allocation7 + $0x10] sm:$0xff]
    %v723 = vld [vmem:[#allocation7 + $0x18] sm:$0xff]
    %v724 = vld [vmem:[#allocation7 + $0x20] sm:$0xff]
    %v725 = vld [vmem:[#allocation7 + $0x28] sm:$0xff]
    %v726 = vld [vmem:[#allocation7 + $0x30] sm:$0xff]
    %v727 = vld [vmem:[#allocation7 + $0x38] sm:$0xff]
    %v728 = vld [vmem:[#allocation7 + $0x40] sm:$0xff]
    %v729 = vld [vmem:[#allocation7 + $0x48] sm:$0xff]
    %v730 = vld [vmem:[#allocation7 + $0x50] sm:$0xff]
    %v731 = vld [vmem:[#allocation7 + $0x58] sm:$0xff]
    %v732 = vld [vmem:[#allocation7 + $0x60] sm:$0xff]
    %v733 = vld [vmem:[#allocation7 + $0x68] sm:$0xff]
    %v734 = vld [vmem:[#allocation7 + $0x70] sm:$0xff]
    %v735 = vld [vmem:[#allocation7 + $0x78] sm:$0xff]
    %v736 = vld [vmem:[#allocation7 + $0x80] sm:$0xff]
    %v737 = vld [vmem:[#allocation7 + $0x88] sm:$0xff]
    %v738 = vld [vmem:[#allocation7 + $0x90] sm:$0xff]
    %v739 = vld [vmem:[#allocation7 + $0x98] sm:$0xff]
    %v740 = vld [vmem:[#allocation7 + $0xa0] sm:$0xff]
    %v741 = vld [vmem:[#allocation7 + $0xa8] sm:$0xff]
    %v742 = vld [vmem:[#allocation7 + $0xb0] sm:$0xff]
    %v743 = vld [vmem:[#allocation7 + $0xb8] sm:$0xff]
    %v744 = vld [vmem:[#allocation7 + $0xc0] sm:$0xff]
    %v745 = vld [vmem:[#allocation7 + $0xc8] sm:$0xff]
    %v746 = vld [vmem:[#allocation7 + $0xd0] sm:$0xff]
    %v747 = vld [vmem:[#allocation7 + $0xd8] sm:$0xff]
    %v748 = vld [vmem:[#allocation7 + $0xe0] sm:$0xff]
    %v749 = vld [vmem:[#allocation7 + $0xe8] sm:$0xff]
    %v750 = vld [vmem:[#allocation7 + $0xf0] sm:$0xff]
    %v751 = vld [vmem:[#allocation7 + $0xf8] sm:$0xff]
    %v752 = vld [vmem:[#allocation7 + $0x100] sm:$0xff]
    %v753 = vld [vmem:[#allocation7 + $0x108] sm:$0xff]
    %v754 = vld [vmem:[#allocation7 + $0x110] sm:$0xff]
    %v755 = vld [vmem:[#allocation7 + $0x118] sm:$0xff]
    %v756 = vld [vmem:[#allocation7 + $0x120] sm:$0xff]
    %v757 = vld [vmem:[#allocation7 + $0x128] sm:$0xff]
    %v758 = vld [vmem:[#allocation7 + $0x130] sm:$0xff]
    %v759 = vld [vmem:[#allocation7 + $0x138] sm:$0xff]
    %v760 = vld [vmem:[#allocation7 + $0x140] sm:$0xff]
    %v761 = vld [vmem:[#allocation7 + $0x148] sm:$0xff]
    %v762 = vld [vmem:[#allocation7 + $0x150] sm:$0xff]
    %v763 = vld [vmem:[#allocation7 + $0x158] sm:$0xff]
    %v764 = vld [vmem:[#allocation7 + $0x160] sm:$0xff]
    %v765 = vld [vmem:[#allocation7 + $0x168] sm:$0xff]
    %v766 = vld [vmem:[#allocation7 + $0x170] sm:$0xff]
    %v767 = vld [vmem:[#allocation7 + $0x178] sm:$0xff]
    %v768 = vld [vmem:[#allocation7 + $0x180] sm:$0xff]
    %v769 = vld [vmem:[#allocation7 + $0x188] sm:$0xff]
    %v770 = vld [vmem:[#allocation7 + $0x190] sm:$0xff]
    %v771 = vld [vmem:[#allocation7 + $0x198] sm:$0xff]
    %v772 = vld [vmem:[#allocation7 + $0x1a0] sm:$0xff]
    %v773 = vld [vmem:[#allocation7 + $0x1a8] sm:$0xff]
    %v774 = vld [vmem:[#allocation7 + $0x1b0] sm:$0xff]
    %v775 = vld [vmem:[#allocation7 + $0x1b8] sm:$0xff]
    %v776 = vld [vmem:[#allocation7 + $0x1c0] sm:$0xff]
    %v777 = vld [vmem:[#allocation7 + $0x1c8] sm:$0xff]
    %v778 = vld [vmem:[#allocation7 + $0x1d0] sm:$0xff]
    %v779 = vld [vmem:[#allocation7 + $0x1d8] sm:$0xff]
    %v780 = vld [vmem:[#allocation7 + $0x1e0] sm:$0xff]
    %v781 = vld [vmem:[#allocation7 + $0x1e8] sm:$0xff]
    %v782 = vld [vmem:[#allocation7 + $0x1f0] sm:$0xff]
    %v783 = vld [vmem:[#allocation7 + $0x1f8] sm:$0xff]
    %v784 = vld [vmem:[#allocation7 + $0x200] sm:$0xff]
    %v785 = vld [vmem:[#allocation7 + $0x208] sm:$0xff]
    %v786 = vld [vmem:[#allocation7 + $0x210] sm:$0xff]
    %v787 = vld [vmem:[#allocation7 + $0x218] sm:$0xff]
    %v788 = vld [vmem:[#allocation7 + $0x220] sm:$0xff]
    %v789 = vld [vmem:[#allocation7 + $0x228] sm:$0xff]
    %v790 = vld [vmem:[#allocation7 + $0x230] sm:$0xff]
    %v791 = vld [vmem:[#allocation7 + $0x238] sm:$0xff]
    %v792 = vld [vmem:[#allocation7 + $0x240] sm:$0xff]
    %v793 = vld [vmem:[#allocation7 + $0x248] sm:$0xff]
    %v794 = vld [vmem:[#allocation7 + $0x250] sm:$0xff]
    %v795 = vld [vmem:[#allocation7 + $0x258] sm:$0xff]
    %v796 = vld [vmem:[#allocation7 + $0x260] sm:$0xff]
    %v797 = vld [vmem:[#allocation7 + $0x268] sm:$0xff]
    %v798 = vld [vmem:[#allocation7 + $0x270] sm:$0xff]
    %v799 = vld [vmem:[#allocation7 + $0x278] sm:$0xff]
    %v800 = vld [vmem:[#allocation7 + $0x280] sm:$0xff]
    %v801 = vld [vmem:[#allocation7 + $0x288] sm:$0xff]
    %v802 = vld [vmem:[#allocation7 + $0x290] sm:$0xff]
    %v803 = vld [vmem:[#allocation7 + $0x298] sm:$0xff]
    %v804 = vld [vmem:[#allocation7 + $0x2a0] sm:$0xff]
    %v805 = vld [vmem:[#allocation7 + $0x2a8] sm:$0xff]
    %v806 = vld [vmem:[#allocation7 + $0x2b0] sm:$0xff]
    %v807 = vld [vmem:[#allocation7 + $0x2b8] sm:$0xff]
    %v808 = vld [vmem:[#allocation7 + $0x2c0] sm:$0xff]
    %v809 = vld [vmem:[#allocation7 + $0x2c8] sm:$0xff]
    %v810 = vld [vmem:[#allocation7 + $0x2d0] sm:$0xff]
    %v811 = vld [vmem:[#allocation7 + $0x2d8] sm:$0xff]
    %v812 = vld [vmem:[#allocation7 + $0x2e0] sm:$0xff]
    %v813 = vld [vmem:[#allocation7 + $0x2e8] sm:$0xff]
    %v814 = vld [vmem:[#allocation7 + $0x2f0] sm:$0xff]
    %v815 = vld [vmem:[#allocation7 + $0x2f8] sm:$0xff]
    %v816 = vld [vmem:[#allocation7 + $0x300] sm:$0xff]
    %v817 = vld [vmem:[#allocation7 + $0x308] sm:$0xff]
    %v818 = vld [vmem:[#allocation7 + $0x310] sm:$0xff]
    %v819 = vld [vmem:[#allocation7 + $0x318] sm:$0xff]
    %v820 = vld [vmem:[#allocation7 + $0x320] sm:$0xff]
    %v821 = vld [vmem:[#allocation7 + $0x328] sm:$0xff]
    %v822 = vld [vmem:[#allocation7 + $0x330] sm:$0xff]
    %v823 = vld [vmem:[#allocation7 + $0x338] sm:$0xff]
    %v824 = vld [vmem:[#allocation7 + $0x340] sm:$0xff]
    %v825 = vld [vmem:[#allocation7 + $0x348] sm:$0xff]
    %v826 = vld [vmem:[#allocation7 + $0x350] sm:$0xff]
    %v827 = vld [vmem:[#allocation7 + $0x358] sm:$0xff]
    %v828 = vld [vmem:[#allocation7 + $0x360] sm:$0xff]
    %v829 = vld [vmem:[#allocation7 + $0x368] sm:$0xff]
    %v830 = vld [vmem:[#allocation7 + $0x370] sm:$0xff]
    %v831 = vld [vmem:[#allocation7 + $0x378] sm:$0xff]
    %v832 = vld [vmem:[#allocation7 + $0x380] sm:$0xff]
    %v833 = vld [vmem:[#allocation7 + $0x388] sm:$0xff]
    %v834 = vld [vmem:[#allocation7 + $0x390] sm:$0xff]
    %v835 = vld [vmem:[#allocation7 + $0x398] sm:$0xff]
    %v836 = vld [vmem:[#allocation7 + $0x3a0] sm:$0xff]
    %v837 = vld [vmem:[#allocation7 + $0x3a8] sm:$0xff]
    %v838 = vld [vmem:[#allocation7 + $0x3b0] sm:$0xff]
    %v839 = vld [vmem:[#allocation7 + $0x3b8] sm:$0xff]
    %v840 = vld [vmem:[#allocation7 + $0x3c0] sm:$0xff]
    %v841 = vld [vmem:[#allocation7 + $0x3c8] sm:$0xff]
    %v842 = vld [vmem:[#allocation7 + $0x3d0] sm:$0xff]
    %v843 = vld [vmem:[#allocation7 + $0x3d8] sm:$0xff]
    %v844 = vld [vmem:[#allocation7 + $0x3e0] sm:$0xff]
    %v845 = vld [vmem:[#allocation7 + $0x3e8] sm:$0xff]
    %v846 = vld [vmem:[#allocation7 + $0x3f0] sm:$0xff]
    %v847 = vld [vmem:[#allocation7 + $0x3f8] sm:$0xff]
    %v976 = vunpack.c.l.b16 %v720
    %v977 = vunpack.c.h.b16 %v720
    %v978 = vunpack.c.l.b16 %v721
    %v979 = vunpack.c.h.b16 %v721
    %v980 = vunpack.c.l.b16 %v722
    %v981 = vunpack.c.h.b16 %v722
    %v982 = vunpack.c.l.b16 %v723
    %v983 = vunpack.c.h.b16 %v723
    %v984 = vunpack.c.l.b16 %v724
    %v985 = vunpack.c.h.b16 %v724
    %v986 = vunpack.c.l.b16 %v725
    %v987 = vunpack.c.h.b16 %v725
    %v988 = vunpack.c.l.b16 %v726
    %v989 = vunpack.c.h.b16 %v726
    %v990 = vunpack.c.l.b16 %v727
    %v991 = vunpack.c.h.b16 %v727
    %v992 = vunpack.c.l.b16 %v728
    %v993 = vunpack.c.h.b16 %v728
    %v994 = vunpack.c.l.b16 %v729
    %v995 = vunpack.c.h.b16 %v729
    %v996 = vunpack.c.l.b16 %v730
    %v997 = vunpack.c.h.b16 %v730
    %v998 = vunpack.c.l.b16 %v731
    %v999 = vunpack.c.h.b16 %v731
    %v1000 = vunpack.c.l.b16 %v732
    %v1001 = vunpack.c.h.b16 %v732
    %v1002 = vunpack.c.l.b16 %v733
    %v1003 = vunpack.c.h.b16 %v733
    %v1004 = vunpack.c.l.b16 %v734
    %v1005 = vunpack.c.h.b16 %v734
    %v1006 = vunpack.c.l.b16 %v735
    %v1007 = vunpack.c.h.b16 %v735
    %v1008 = vunpack.c.l.b16 %v736
    %v1009 = vunpack.c.h.b16 %v736
    %v1010 = vunpack.c.l.b16 %v737
    %v1011 = vunpack.c.h.b16 %v737
    %v1012 = vunpack.c.l.b16 %v738
    %v1013 = vunpack.c.h.b16 %v738
    %v1014 = vunpack.c.l.b16 %v739
    %v1015 = vunpack.c.h.b16 %v739
    %v1016 = vunpack.c.l.b16 %v740
    %v1017 = vunpack.c.h.b16 %v740
    %v1018 = vunpack.c.l.b16 %v741
    %v1019 = vunpack.c.h.b16 %v741
    %v1020 = vunpack.c.l.b16 %v742
    %v1021 = vunpack.c.h.b16 %v742
    %v1022 = vunpack.c.l.b16 %v743
    %v1023 = vunpack.c.h.b16 %v743
    %v1024 = vunpack.c.l.b16 %v744
    %v1025 = vunpack.c.h.b16 %v744
    %v1026 = vunpack.c.l.b16 %v745
    %v1027 = vunpack.c.h.b16 %v745
    %v1028 = vunpack.c.l.b16 %v746
    %v1029 = vunpack.c.h.b16 %v746
    %v1030 = vunpack.c.l.b16 %v747
    %v1031 = vunpack.c.h.b16 %v747
    %v1032 = vunpack.c.l.b16 %v748
    %v1033 = vunpack.c.h.b16 %v748
    %v1034 = vunpack.c.l.b16 %v749
    %v1035 = vunpack.c.h.b16 %v749
    %v1036 = vunpack.c.l.b16 %v750
    %v1037 = vunpack.c.h.b16 %v750
    %v1038 = vunpack.c.l.b16 %v751
    %v1039 = vunpack.c.h.b16 %v751
    %v1040 = vunpack.c.l.b16 %v752
    %v1041 = vunpack.c.h.b16 %v752
    %v1042 = vunpack.c.l.b16 %v753
    %v1043 = vunpack.c.h.b16 %v753
    %v1044 = vunpack.c.l.b16 %v754
    %v1045 = vunpack.c.h.b16 %v754
    %v1046 = vunpack.c.l.b16 %v755
    %v1047 = vunpack.c.h.b16 %v755
    %v1048 = vunpack.c.l.b16 %v756
    %v1049 = vunpack.c.h.b16 %v756
    %v1050 = vunpack.c.l.b16 %v757
    %v1051 = vunpack.c.h.b16 %v757
    %v1052 = vunpack.c.l.b16 %v758
    %v1053 = vunpack.c.h.b16 %v758
    %v1054 = vunpack.c.l.b16 %v759
    %v1055 = vunpack.c.h.b16 %v759
    %v1056 = vunpack.c.l.b16 %v760
    %v1057 = vunpack.c.h.b16 %v760
    %v1058 = vunpack.c.l.b16 %v761
    %v1059 = vunpack.c.h.b16 %v761
    %v1060 = vunpack.c.l.b16 %v762
    %v1061 = vunpack.c.h.b16 %v762
    %v1062 = vunpack.c.l.b16 %v763
    %v1063 = vunpack.c.h.b16 %v763
    %v1064 = vunpack.c.l.b16 %v764
    %v1065 = vunpack.c.h.b16 %v764
    %v1066 = vunpack.c.l.b16 %v765
    %v1067 = vunpack.c.h.b16 %v765
    %v1068 = vunpack.c.l.b16 %v766
    %v1069 = vunpack.c.h.b16 %v766
    %v1070 = vunpack.c.l.b16 %v767
    %v1071 = vunpack.c.h.b16 %v767
    %v1072 = vunpack.c.l.b16 %v768
    %v1073 = vunpack.c.h.b16 %v768
    %v1074 = vunpack.c.l.b16 %v769
    %v1075 = vunpack.c.h.b16 %v769
    %v1076 = vunpack.c.l.b16 %v770
    %v1077 = vunpack.c.h.b16 %v770
    %v1078 = vunpack.c.l.b16 %v771
    %v1079 = vunpack.c.h.b16 %v771
    %v1080 = vunpack.c.l.b16 %v772
    %v1081 = vunpack.c.h.b16 %v772
    %v1082 = vunpack.c.l.b16 %v773
    %v1083 = vunpack.c.h.b16 %v773
    %v1084 = vunpack.c.l.b16 %v774
    %v1085 = vunpack.c.h.b16 %v774
    %v1086 = vunpack.c.l.b16 %v775
    %v1087 = vunpack.c.h.b16 %v775
    %v1088 = vunpack.c.l.b16 %v776
    %v1089 = vunpack.c.h.b16 %v776
    %v1090 = vunpack.c.l.b16 %v777
    %v1091 = vunpack.c.h.b16 %v777
    %v1092 = vunpack.c.l.b16 %v778
    %v1093 = vunpack.c.h.b16 %v778
    %v1094 = vunpack.c.l.b16 %v779
    %v1095 = vunpack.c.h.b16 %v779
    %v1096 = vunpack.c.l.b16 %v780
    %v1097 = vunpack.c.h.b16 %v780
    %v1098 = vunpack.c.l.b16 %v781
    %v1099 = vunpack.c.h.b16 %v781
    %v1100 = vunpack.c.l.b16 %v782
    %v1101 = vunpack.c.h.b16 %v782
    %v1102 = vunpack.c.l.b16 %v783
    %v1103 = vunpack.c.h.b16 %v783
    %v1104 = vunpack.c.l.b16 %v784
    %v1105 = vunpack.c.h.b16 %v784
    %v1106 = vunpack.c.l.b16 %v785
    %v1107 = vunpack.c.h.b16 %v785
    %v1108 = vunpack.c.l.b16 %v786
    %v1109 = vunpack.c.h.b16 %v786
    %v1110 = vunpack.c.l.b16 %v787
    %v1111 = vunpack.c.h.b16 %v787
    %v1112 = vunpack.c.l.b16 %v788
    %v1113 = vunpack.c.h.b16 %v788
    %v1114 = vunpack.c.l.b16 %v789
    %v1115 = vunpack.c.h.b16 %v789
    %v1116 = vunpack.c.l.b16 %v790
    %v1117 = vunpack.c.h.b16 %v790
    %v1118 = vunpack.c.l.b16 %v791
    %v1119 = vunpack.c.h.b16 %v791
    %v1120 = vunpack.c.l.b16 %v792
    %v1121 = vunpack.c.h.b16 %v792
    %v1122 = vunpack.c.l.b16 %v793
    %v1123 = vunpack.c.h.b16 %v793
    %v1124 = vunpack.c.l.b16 %v794
    %v1125 = vunpack.c.h.b16 %v794
    %v1126 = vunpack.c.l.b16 %v795
    %v1127 = vunpack.c.h.b16 %v795
    %v1128 = vunpack.c.l.b16 %v796
    %v1129 = vunpack.c.h.b16 %v796
    %v1130 = vunpack.c.l.b16 %v797
    %v1131 = vunpack.c.h.b16 %v797
    %v1132 = vunpack.c.l.b16 %v798
    %v1133 = vunpack.c.h.b16 %v798
    %v1134 = vunpack.c.l.b16 %v799
    %v1135 = vunpack.c.h.b16 %v799
    %v1136 = vunpack.c.l.b16 %v800
    %v1137 = vunpack.c.h.b16 %v800
    %v1138 = vunpack.c.l.b16 %v801
    %v1139 = vunpack.c.h.b16 %v801
    %v1140 = vunpack.c.l.b16 %v802
    %v1141 = vunpack.c.h.b16 %v802
    %v1142 = vunpack.c.l.b16 %v803
    %v1143 = vunpack.c.h.b16 %v803
    %v1144 = vunpack.c.l.b16 %v804
    %v1145 = vunpack.c.h.b16 %v804
    %v1146 = vunpack.c.l.b16 %v805
    %v1147 = vunpack.c.h.b16 %v805
    %v1148 = vunpack.c.l.b16 %v806
    %v1149 = vunpack.c.h.b16 %v806
    %v1150 = vunpack.c.l.b16 %v807
    %v1151 = vunpack.c.h.b16 %v807
    %v1152 = vunpack.c.l.b16 %v808
    %v1153 = vunpack.c.h.b16 %v808
    %v1154 = vunpack.c.l.b16 %v809
    %v1155 = vunpack.c.h.b16 %v809
    %v1156 = vunpack.c.l.b16 %v810
    %v1157 = vunpack.c.h.b16 %v810
    %v1158 = vunpack.c.l.b16 %v811
    %v1159 = vunpack.c.h.b16 %v811
    %v1160 = vunpack.c.l.b16 %v812
    %v1161 = vunpack.c.h.b16 %v812
    %v1162 = vunpack.c.l.b16 %v813
    %v1163 = vunpack.c.h.b16 %v813
    %v1164 = vunpack.c.l.b16 %v814
    %v1165 = vunpack.c.h.b16 %v814
    %v1166 = vunpack.c.l.b16 %v815
    %v1167 = vunpack.c.h.b16 %v815
    %v1168 = vunpack.c.l.b16 %v816
    %v1169 = vunpack.c.h.b16 %v816
    %v1170 = vunpack.c.l.b16 %v817
    %v1171 = vunpack.c.h.b16 %v817
    %v1172 = vunpack.c.l.b16 %v818
    %v1173 = vunpack.c.h.b16 %v818
    %v1174 = vunpack.c.l.b16 %v819
    %v1175 = vunpack.c.h.b16 %v819
    %v1176 = vunpack.c.l.b16 %v820
    %v1177 = vunpack.c.h.b16 %v820
    %v1178 = vunpack.c.l.b16 %v821
    %v1179 = vunpack.c.h.b16 %v821
    %v1180 = vunpack.c.l.b16 %v822
    %v1181 = vunpack.c.h.b16 %v822
    %v1182 = vunpack.c.l.b16 %v823
    %v1183 = vunpack.c.h.b16 %v823
    %v1184 = vunpack.c.l.b16 %v824
    %v1185 = vunpack.c.h.b16 %v824
    %v1186 = vunpack.c.l.b16 %v825
    %v1187 = vunpack.c.h.b16 %v825
    %v1188 = vunpack.c.l.b16 %v826
    %v1189 = vunpack.c.h.b16 %v826
    %v1190 = vunpack.c.l.b16 %v827
    %v1191 = vunpack.c.h.b16 %v827
    %v1192 = vunpack.c.l.b16 %v828
    %v1193 = vunpack.c.h.b16 %v828
    %v1194 = vunpack.c.l.b16 %v829
    %v1195 = vunpack.c.h.b16 %v829
    %v1196 = vunpack.c.l.b16 %v830
    %v1197 = vunpack.c.h.b16 %v830
    %v1198 = vunpack.c.l.b16 %v831
    %v1199 = vunpack.c.h.b16 %v831
    %v1200 = vunpack.c.l.b16 %v832
    %v1201 = vunpack.c.h.b16 %v832
    %v1202 = vunpack.c.l.b16 %v833
    %v1203 = vunpack.c.h.b16 %v833
    %v1204 = vunpack.c.l.b16 %v834
    %v1205 = vunpack.c.h.b16 %v834
    %v1206 = vunpack.c.l.b16 %v835
    %v1207 = vunpack.c.h.b16 %v835
    %v1208 = vunpack.c.l.b16 %v836
    %v1209 = vunpack.c.h.b16 %v836
    %v1210 = vunpack.c.l.b16 %v837
    %v1211 = vunpack.c.h.b16 %v837
    %v1212 = vunpack.c.l.b16 %v838
    %v1213 = vunpack.c.h.b16 %v838
    %v1214 = vunpack.c.l.b16 %v839
    %v1215 = vunpack.c.h.b16 %v839
    %v1216 = vunpack.c.l.b16 %v840
    %v1217 = vunpack.c.h.b16 %v840
    %v1218 = vunpack.c.l.b16 %v841
    %v1219 = vunpack.c.h.b16 %v841
    %v1220 = vunpack.c.l.b16 %v842
    %v1221 = vunpack.c.h.b16 %v842
    %v1222 = vunpack.c.l.b16 %v843
    %v1223 = vunpack.c.h.b16 %v843
    %v1224 = vunpack.c.l.b16 %v844
    %v1225 = vunpack.c.h.b16 %v844
    %v1226 = vunpack.c.l.b16 %v845
    %v1227 = vunpack.c.h.b16 %v845
    %v1228 = vunpack.c.l.b16 %v846
    %v1229 = vunpack.c.h.b16 %v846
    %v1230 = vunpack.c.l.b16 %v847
    %v1231 = vunpack.c.h.b16 %v847
    %v1232 = vpack.c.b16 %v980, %v976
    %v1233 = vpack.c.b16 %v981, %v977
    %v1234 = vpack.c.b16 %v982, %v978
    %v1235 = vpack.c.b16 %v983, %v979
    %v1236 = vpack.c.b16 %v988, %v984
    %v1237 = vpack.c.b16 %v989, %v985
    %v1238 = vpack.c.b16 %v990, %v986
    %v1239 = vpack.c.b16 %v991, %v987
    %v1240 = vpack.c.b16 %v996, %v992
    %v1241 = vpack.c.b16 %v997, %v993
    %v1242 = vpack.c.b16 %v998, %v994
    %v1243 = vpack.c.b16 %v999, %v995
    %v1244 = vpack.c.b16 %v1004, %v1000
    %v1245 = vpack.c.b16 %v1005, %v1001
    %v1246 = vpack.c.b16 %v1006, %v1002
    %v1247 = vpack.c.b16 %v1007, %v1003
    %v1248 = vpack.c.b16 %v1012, %v1008
    %v1249 = vpack.c.b16 %v1013, %v1009
    %v1250 = vpack.c.b16 %v1014, %v1010
    %v1251 = vpack.c.b16 %v1015, %v1011
    %v1252 = vpack.c.b16 %v1020, %v1016
    %v1253 = vpack.c.b16 %v1021, %v1017
    %v1254 = vpack.c.b16 %v1022, %v1018
    %v1255 = vpack.c.b16 %v1023, %v1019
    %v1256 = vpack.c.b16 %v1028, %v1024
    %v1257 = vpack.c.b16 %v1029, %v1025
    %v1258 = vpack.c.b16 %v1030, %v1026
    %v1259 = vpack.c.b16 %v1031, %v1027
    %v1260 = vpack.c.b16 %v1036, %v1032
    %v1261 = vpack.c.b16 %v1037, %v1033
    %v1262 = vpack.c.b16 %v1038, %v1034
    %v1263 = vpack.c.b16 %v1039, %v1035
    %v1264 = vpack.c.b16 %v1044, %v1040
    %v1265 = vpack.c.b16 %v1045, %v1041
    %v1266 = vpack.c.b16 %v1046, %v1042
    %v1267 = vpack.c.b16 %v1047, %v1043
    %v1268 = vpack.c.b16 %v1052, %v1048
    %v1269 = vpack.c.b16 %v1053, %v1049
    %v1270 = vpack.c.b16 %v1054, %v1050
    %v1271 = vpack.c.b16 %v1055, %v1051
    %v1272 = vpack.c.b16 %v1060, %v1056
    %v1273 = vpack.c.b16 %v1061, %v1057
    %v1274 = vpack.c.b16 %v1062, %v1058
    %v1275 = vpack.c.b16 %v1063, %v1059
    %v1276 = vpack.c.b16 %v1068, %v1064
    %v1277 = vpack.c.b16 %v1069, %v1065
    %v1278 = vpack.c.b16 %v1070, %v1066
    %v1279 = vpack.c.b16 %v1071, %v1067
    %v1280 = vpack.c.b16 %v1076, %v1072
    %v1281 = vpack.c.b16 %v1077, %v1073
    %v1282 = vpack.c.b16 %v1078, %v1074
    %v1283 = vpack.c.b16 %v1079, %v1075
    %v1284 = vpack.c.b16 %v1084, %v1080
    %v1285 = vpack.c.b16 %v1085, %v1081
    %v1286 = vpack.c.b16 %v1086, %v1082
    %v1287 = vpack.c.b16 %v1087, %v1083
    %v1288 = vpack.c.b16 %v1092, %v1088
    %v1289 = vpack.c.b16 %v1093, %v1089
    %v1290 = vpack.c.b16 %v1094, %v1090
    %v1291 = vpack.c.b16 %v1095, %v1091
    %v1292 = vpack.c.b16 %v1100, %v1096
    %v1293 = vpack.c.b16 %v1101, %v1097
    %v1294 = vpack.c.b16 %v1102, %v1098
    %v1295 = vpack.c.b16 %v1103, %v1099
    %v1296 = vpack.c.b16 %v1108, %v1104
    %v1297 = vpack.c.b16 %v1109, %v1105
    %v1298 = vpack.c.b16 %v1110, %v1106
    %v1299 = vpack.c.b16 %v1111, %v1107
    %v1300 = vpack.c.b16 %v1116, %v1112
    %v1301 = vpack.c.b16 %v1117, %v1113
    %v1302 = vpack.c.b16 %v1118, %v1114
    %v1303 = vpack.c.b16 %v1119, %v1115
    %v1304 = vpack.c.b16 %v1124, %v1120
    %v1305 = vpack.c.b16 %v1125, %v1121
    %v1306 = vpack.c.b16 %v1126, %v1122
    %v1307 = vpack.c.b16 %v1127, %v1123
    %v1308 = vpack.c.b16 %v1132, %v1128
    %v1309 = vpack.c.b16 %v1133, %v1129
    %v1310 = vpack.c.b16 %v1134, %v1130
    %v1311 = vpack.c.b16 %v1135, %v1131
    %v1312 = vpack.c.b16 %v1140, %v1136
    %v1313 = vpack.c.b16 %v1141, %v1137
    %v1314 = vpack.c.b16 %v1142, %v1138
    %v1315 = vpack.c.b16 %v1143, %v1139
    %v1316 = vpack.c.b16 %v1148, %v1144
    %v1317 = vpack.c.b16 %v1149, %v1145
    %v1318 = vpack.c.b16 %v1150, %v1146
    %v1319 = vpack.c.b16 %v1151, %v1147
    %v1320 = vpack.c.b16 %v1156, %v1152
    %v1321 = vpack.c.b16 %v1157, %v1153
    %v1322 = vpack.c.b16 %v1158, %v1154
    %v1323 = vpack.c.b16 %v1159, %v1155
    %v1324 = vpack.c.b16 %v1164, %v1160
    %v1325 = vpack.c.b16 %v1165, %v1161
    %v1326 = vpack.c.b16 %v1166, %v1162
    %v1327 = vpack.c.b16 %v1167, %v1163
    %v1328 = vpack.c.b16 %v1172, %v1168
    %v1329 = vpack.c.b16 %v1173, %v1169
    %v1330 = vpack.c.b16 %v1174, %v1170
    %v1331 = vpack.c.b16 %v1175, %v1171
    %v1332 = vpack.c.b16 %v1180, %v1176
    %v1333 = vpack.c.b16 %v1181, %v1177
    %v1334 = vpack.c.b16 %v1182, %v1178
    %v1335 = vpack.c.b16 %v1183, %v1179
    %v1336 = vpack.c.b16 %v1188, %v1184
    %v1337 = vpack.c.b16 %v1189, %v1185
    %v1338 = vpack.c.b16 %v1190, %v1186
    %v1339 = vpack.c.b16 %v1191, %v1187
    %v1340 = vpack.c.b16 %v1196, %v1192
    %v1341 = vpack.c.b16 %v1197, %v1193
    %v1342 = vpack.c.b16 %v1198, %v1194
    %v1343 = vpack.c.b16 %v1199, %v1195
    %v1344 = vpack.c.b16 %v1204, %v1200
    %v1345 = vpack.c.b16 %v1205, %v1201
    %v1346 = vpack.c.b16 %v1206, %v1202
    %v1347 = vpack.c.b16 %v1207, %v1203
    %v1348 = vpack.c.b16 %v1212, %v1208
    %v1349 = vpack.c.b16 %v1213, %v1209
    %v1350 = vpack.c.b16 %v1214, %v1210
    %v1351 = vpack.c.b16 %v1215, %v1211
    %v1352 = vpack.c.b16 %v1220, %v1216
    %v1353 = vpack.c.b16 %v1221, %v1217
    %v1354 = vpack.c.b16 %v1222, %v1218
    %v1355 = vpack.c.b16 %v1223, %v1219
    %v1356 = vpack.c.b16 %v1228, %v1224
    %v1357 = vpack.c.b16 %v1229, %v1225
    %v1358 = vpack.c.b16 %v1230, %v1226
    %v1359 = vpack.c.b16 %v1231, %v1227
    %1488 = vmatprep.subr.bf16.mxu0 %v1261
    %1489 = vmatpush1.bf16.msra.mxu0 %v1260
    %1490 = vmatprep.subr.bf16.mxu0 %v1257
    %1491 = vmatpush1.bf16.msra.mxu0 %v1256
    %1492 = vmatprep.subr.bf16.mxu0 %v1253
    %1493 = vmatpush1.bf16.msra.mxu0 %v1252
    %1494 = vmatprep.subr.bf16.mxu0 %v1249
    %1495 = vmatpush1.bf16.msra.mxu0 %v1248
    %1496 = vmatprep.subr.bf16.mxu0 %v1245
    %1497 = vmatpush1.bf16.msra.mxu0 %v1244
    %1498 = vmatprep.subr.bf16.mxu0 %v1241
    %1499 = vmatpush1.bf16.msra.mxu0 %v1240
    %1500 = vmatprep.subr.bf16.mxu0 %v1237
    %1501 = vmatpush1.bf16.msra.mxu0 %v1236
    %1502 = vmatprep.subr.bf16.mxu0 %v1233
    %1503 = vmatpush1.bf16.msra.mxu0 %v1232
    %1504 = vmatprep.subr.bf16.mxu0 %v1293
    %1505 = vmatpush2.bf16.msra.mxu0 %v1292
    %1506 = vmatprep.subr.bf16.mxu0 %v1289
    %1507 = vmatpush2.bf16.msra.mxu0 %v1288
    %1508 = vmatprep.subr.bf16.mxu0 %v1285
    %1509 = vmatpush2.bf16.msra.mxu0 %v1284
    %1510 = vmatprep.subr.bf16.mxu0 %v1281
    %1511 = vmatpush2.bf16.msra.mxu0 %v1280
    %1512 = vmatprep.subr.bf16.mxu0 %v1277
    %1513 = vmatpush2.bf16.msra.mxu0 %v1276
    %1514 = vmatprep.subr.bf16.mxu0 %v1273
    %1515 = vmatpush2.bf16.msra.mxu0 %v1272
    %1516 = vmatprep.subr.bf16.mxu0 %v1269
    %1517 = vmatpush2.bf16.msra.mxu0 %v1268
    %1518 = vmatprep.subr.bf16.mxu0 %v1265
    %1519 = vmatpush2.bf16.msra.mxu0 %v1264
    %1520 = vmatprep.mubr.bf16.mxu0 %v717
    %1521 = vmatmul.mubr.bf16.gmra.mxu0 %v716
    %v1522 = vpop.f32.mrf.mxu0
    %v1523 = vadd.f32 0.0, %v1522
    %v1524 = vpop.f32.mrf.mxu0
    %v1525 = vadd.f32 0.0, %v1524
    %v1526 = vpop.f32.mrf.mxu0
    %v1527 = vpop.f32.mrf.mxu0
    %1528 = vdwg.mxu0
    %1529 = vmatprep.subr.bf16.mxu0 %v1325
    %1530 = vmatpush1.bf16.msra.mxu0 %v1324
    %1531 = vmatprep.subr.bf16.mxu0 %v1321
    %1532 = vmatpush1.bf16.msra.mxu0 %v1320
    %1533 = vmatprep.subr.bf16.mxu0 %v1317
    %1534 = vmatpush1.bf16.msra.mxu0 %v1316
    %1535 = vmatprep.subr.bf16.mxu0 %v1313
    %1536 = vmatpush1.bf16.msra.mxu0 %v1312
    %1537 = vmatprep.subr.bf16.mxu0 %v1309
    %1538 = vmatpush1.bf16.msra.mxu0 %v1308
    %1539 = vmatprep.subr.bf16.mxu0 %v1305
    %1540 = vmatpush1.bf16.msra.mxu0 %v1304
    %1541 = vmatprep.subr.bf16.mxu0 %v1301
    %1542 = vmatpush1.bf16.msra.mxu0 %v1300
    %1543 = vmatprep.subr.bf16.mxu0 %v1297
    %1544 = vmatpush1.bf16.msra.mxu0 %v1296
    %1545 = vmatprep.subr.bf16.mxu0 %v1357
    %1546 = vmatpush2.bf16.msra.mxu0 %v1356
    %1547 = vmatprep.subr.bf16.mxu0 %v1353
    %1548 = vmatpush2.bf16.msra.mxu0 %v1352
    %1549 = vmatprep.subr.bf16.mxu0 %v1349
    %1550 = vmatpush2.bf16.msra.mxu0 %v1348
    %1551 = vmatprep.subr.bf16.mxu0 %v1345
    %1552 = vmatpush2.bf16.msra.mxu0 %v1344
    %1553 = vmatprep.subr.bf16.mxu0 %v1341
    %1554 = vmatpush2.bf16.msra.mxu0 %v1340
    %1555 = vmatprep.subr.bf16.mxu0 %v1337
    %1556 = vmatpush2.bf16.msra.mxu0 %v1336
    %1557 = vmatprep.subr.bf16.mxu0 %v1333
    %1558 = vmatpush2.bf16.msra.mxu0 %v1332
    %1559 = vmatprep.subr.bf16.mxu0 %v1329
    %1560 = vmatpush2.bf16.msra.mxu0 %v1328
    %1561 = vmatprep.mubr.bf16.mxu0 %v719
    %1562 = vmatmul.mubr.bf16.gmra.mxu0 %v718
    %v1563 = vpop.f32.mrf.mxu0
    %v1564 = vadd.f32 %v1523, %v1563
    %v1565 = vpop.f32.mrf.mxu0
    %v1566 = vadd.f32 %v1525, %v1565
    %v1567 = vpop.f32.mrf.mxu0
    %v1568 = vpop.f32.mrf.mxu0
    %1569 = vdwg.mxu0
    %1570 = vmatprep.subr.bf16.mxu0 %v1263
    %1571 = vmatpush1.bf16.msra.mxu0 %v1262
    %1572 = vmatprep.subr.bf16.mxu0 %v1259
    %1573 = vmatpush1.bf16.msra.mxu0 %v1258
    %1574 = vmatprep.subr.bf16.mxu0 %v1255
    %1575 = vmatpush1.bf16.msra.mxu0 %v1254
    %1576 = vmatprep.subr.bf16.mxu0 %v1251
    %1577 = vmatpush1.bf16.msra.mxu0 %v1250
    %1578 = vmatprep.subr.bf16.mxu0 %v1247
    %1579 = vmatpush1.bf16.msra.mxu0 %v1246
    %1580 = vmatprep.subr.bf16.mxu0 %v1243
    %1581 = vmatpush1.bf16.msra.mxu0 %v1242
    %1582 = vmatprep.subr.bf16.mxu0 %v1239
    %1583 = vmatpush1.bf16.msra.mxu0 %v1238
    %1584 = vmatprep.subr.bf16.mxu0 %v1235
    %1585 = vmatpush1.bf16.msra.mxu0 %v1234
    %1586 = vmatprep.subr.bf16.mxu0 %v1295
    %1587 = vmatpush2.bf16.msra.mxu0 %v1294
    %1588 = vmatprep.subr.bf16.mxu0 %v1291
    %1589 = vmatpush2.bf16.msra.mxu0 %v1290
    %1590 = vmatprep.subr.bf16.mxu0 %v1287
    %1591 = vmatpush2.bf16.msra.mxu0 %v1286
    %1592 = vmatprep.subr.bf16.mxu0 %v1283
    %1593 = vmatpush2.bf16.msra.mxu0 %v1282
    %1594 = vmatprep.subr.bf16.mxu0 %v1279
    %1595 = vmatpush2.bf16.msra.mxu0 %v1278
    %1596 = vmatprep.subr.bf16.mxu0 %v1275
    %1597 = vmatpush2.bf16.msra.mxu0 %v1274
    %1598 = vmatprep.subr.bf16.mxu0 %v1271
    %1599 = vmatpush2.bf16.msra.mxu0 %v1270
    %1600 = vmatprep.subr.bf16.mxu0 %v1267
    %1601 = vmatpush2.bf16.msra.mxu0 %v1266
    %1602 = vmatprep.mubr.bf16.mxu0 %v717
    %1603 = vmatmul.mubr.bf16.gmra.mxu0 %v716
    %v1604 = vpop.f32.mrf.mxu0
    %v1605 = vadd.f32 0.0, %v1604
    %v1606 = vpop.f32.mrf.mxu0
    %v1607 = vadd.f32 0.0, %v1606
    %v1608 = vpop.f32.mrf.mxu0
    %v1609 = vpop.f32.mrf.mxu0
    %1610 = vdwg.mxu0
    %1611 = vmatprep.subr.bf16.mxu0 %v1327
    %1612 = vmatpush1.bf16.msra.mxu0 %v1326
    %1613 = vmatprep.subr.bf16.mxu0 %v1323
    %1614 = vmatpush1.bf16.msra.mxu0 %v1322
    %1615 = vmatprep.subr.bf16.mxu0 %v1319
    %1616 = vmatpush1.bf16.msra.mxu0 %v1318
    %1617 = vmatprep.subr.bf16.mxu0 %v1315
    %1618 = vmatpush1.bf16.msra.mxu0 %v1314
    %1619 = vmatprep.subr.bf16.mxu0 %v1311
    %1620 = vmatpush1.bf16.msra.mxu0 %v1310
    %1621 = vmatprep.subr.bf16.mxu0 %v1307
    %1622 = vmatpush1.bf16.msra.mxu0 %v1306
    %1623 = vmatprep.subr.bf16.mxu0 %v1303
    %1624 = vmatpush1.bf16.msra.mxu0 %v1302
    %1625 = vmatprep.subr.bf16.mxu0 %v1299
    %1626 = vmatpush1.bf16.msra.mxu0 %v1298
    %1627 = vmatprep.subr.bf16.mxu0 %v1359
    %1628 = vmatpush2.bf16.msra.mxu0 %v1358
    %1629 = vmatprep.subr.bf16.mxu0 %v1355
    %1630 = vmatpush2.bf16.msra.mxu0 %v1354
    %1631 = vmatprep.subr.bf16.mxu0 %v1351
    %1632 = vmatpush2.bf16.msra.mxu0 %v1350
    %1633 = vmatprep.subr.bf16.mxu0 %v1347
    %1634 = vmatpush2.bf16.msra.mxu0 %v1346
    %1635 = vmatprep.subr.bf16.mxu0 %v1343
    %1636 = vmatpush2.bf16.msra.mxu0 %v1342
    %1637 = vmatprep.subr.bf16.mxu0 %v1339
    %1638 = vmatpush2.bf16.msra.mxu0 %v1338
    %1639 = vmatprep.subr.bf16.mxu0 %v1335
    %1640 = vmatpush2.bf16.msra.mxu0 %v1334
    %1641 = vmatprep.subr.bf16.mxu0 %v1331
    %1642 = vmatpush2.bf16.msra.mxu0 %v1330
    %1643 = vmatprep.mubr.bf16.mxu0 %v719
    %1644 = vmatmul.mubr.bf16.gmra.mxu0 %v718
    %v1645 = vpop.f32.mrf.mxu0
    %v1646 = vadd.f32 %v1605, %v1645
    %v1647 = vpop.f32.mrf.mxu0
    %v1648 = vadd.f32 %v1607, %v1647
    %v1649 = vpop.f32.mrf.mxu0
    %v1650 = vpop.f32.mrf.mxu0
    %1651 = vdwg.mxu0
    %v1652 = vrot.slane %v1564, 4
    %v1653 = vadd.f32 %v1564, %v1652
    %v1654 = vrot.slane %v1653, 2
    %v1655 = vadd.f32 %v1653, %v1654
    %v1656 = vrot.slane %v1655, 1
    %v1657 = vadd.f32 %v1655, %v1656
    %v1658 = vrot.slane %v1566, 4
    %v1659 = vadd.f32 %v1566, %v1658
    %v1660 = vrot.slane %v1659, 2
    %v1661 = vadd.f32 %v1659, %v1660
    %v1662 = vrot.slane %v1661, 1
    %v1663 = vadd.f32 %v1661, %v1662
    %v1664 = vrot.slane %v1646, 4
    %v1665 = vadd.f32 %v1646, %v1664
    %v1666 = vrot.slane %v1665, 2
    %v1667 = vadd.f32 %v1665, %v1666
    %v1668 = vrot.slane %v1667, 1
    %v1669 = vadd.f32 %v1667, %v1668
    %v1670 = vrot.slane %v1648, 4
    %v1671 = vadd.f32 %v1648, %v1670
    %v1672 = vrot.slane %v1671, 2
    %v1673 = vadd.f32 %v1671, %v1672
    %v1674 = vrot.slane %v1673, 1
    %v1675 = vadd.f32 %v1673, %v1674
    %v1676 = vmul.f32 %v1657, %v583
    %v1677 = vmul.f32 %v1663, %v583
    %v1678 = vmul.f32 %v1669, %v583
    %v1679 = vmul.f32 %v1675, %v583
    %v1680 = vmul.f32 %v1564, %v1564
    %v1681 = vmul.f32 %v1566, %v1566
    %v1682 = vmul.f32 %v1646, %v1646
    %v1683 = vmul.f32 %v1648, %v1648
    %v1684 = vrot.slane %v1680, 4
    %v1685 = vadd.f32 %v1680, %v1684
    %v1686 = vrot.slane %v1685, 2
    %v1687 = vadd.f32 %v1685, %v1686
    %v1688 = vrot.slane %v1687, 1
    %v1689 = vadd.f32 %v1687, %v1688
    %v1690 = vrot.slane %v1681, 4
    %v1691 = vadd.f32 %v1681, %v1690
    %v1692 = vrot.slane %v1691, 2
    %v1693 = vadd.f32 %v1691, %v1692
    %v1694 = vrot.slane %v1693, 1
    %v1695 = vadd.f32 %v1693, %v1694
    %v1696 = vrot.slane %v1682, 4
    %v1697 = vadd.f32 %v1682, %v1696
    %v1698 = vrot.slane %v1697, 2
    %v1699 = vadd.f32 %v1697, %v1698
    %v1700 = vrot.slane %v1699, 1
    %v1701 = vadd.f32 %v1699, %v1700
    %v1702 = vrot.slane %v1683, 4
    %v1703 = vadd.f32 %v1683, %v1702
    %v1704 = vrot.slane %v1703, 2
    %v1705 = vadd.f32 %v1703, %v1704
    %v1706 = vrot.slane %v1705, 1
    %v1707 = vadd.f32 %v1705, %v1706
    %v1708 = vmul.f32 %v1689, %v583
    %v1709 = vmul.f32 %v1695, %v583
    %v1710 = vmul.f32 %v1701, %v583
    %v1711 = vmul.f32 %v1707, %v583
    %v1712 = vmul.f32 %v1676, %v1676
    %v1713 = vmul.f32 %v1677, %v1677
    %v1714 = vmul.f32 %v1678, %v1678
    %v1715 = vmul.f32 %v1679, %v1679
    %v1716 = vsub.f32 %v1708, %v1712
    %v1717 = vsub.f32 %v1709, %v1713
    %v1718 = vsub.f32 %v1710, %v1714
    %v1719 = vsub.f32 %v1711, %v1715
    %v1720 = vmax.f32 %v1716, 0.0
    %v1721 = vmax.f32 %v1717, 0.0
    %v1722 = vmax.f32 %v1718, 0.0
    %v1723 = vmax.f32 %v1719, 0.0
    %v1724 = vadd.f32 %v1720, 1e-05
    %v1725 = vadd.f32 %v1721, 1e-05
    %v1726 = vadd.f32 %v1722, 1e-05
    %v1727 = vadd.f32 %v1723, 1e-05
    %v1728 = vrsqrt.pop %v1724
    %v1729 = vrsqrt.pop %v1725
    %v1730 = vrsqrt.pop %v1726
    %v1731 = vrsqrt.pop %v1727
    %v1732 = vmul.f32 %v89, %v1728
    %v1733 = vmul.f32 %v90, %v1729
    %v1734 = vmul.f32 %v91, %v1730
    %v1735 = vmul.f32 %v92, %v1731
    %v1736 = vmul.f32 %v1676, %v1732
    %v1737 = vmul.f32 %v1677, %v1733
    %v1738 = vmul.f32 %v1678, %v1734
    %v1739 = vmul.f32 %v1679, %v1735
    %v1744 = vrot.slane %v1736, 7
    %v1745 = vrot.slane %v1737, 7
    %v1746 = vrot.slane %v1738, 7
    %v1747 = vrot.slane %v1739, 7
    %v1752 = vsub.f32 %v89, %v1744
    %v1753 = vsub.f32 %v90, %v1745
    %v1754 = vsub.f32 %v91, %v1746
    %v1755 = vsub.f32 %v92, %v1747
    %v1756 = vlaneseq
    %v1757 = vshrl.u32 %v1756, 7
    %v1758 = vsub.s32 2, %v1757
    %v1759 = vrot.slane %v1732, %v1758
    %v1760 = vlaneseq
    %v1761 = vshrl.u32 %v1760, 7
    %v1762 = vsub.s32 2, %v1761
    %v1763 = vrot.slane %v1733, %v1762
    %v1764 = vlaneseq
    %v1765 = vshrl.u32 %v1764, 7
    %v1766 = vsub.s32 2, %v1765
    %v1767 = vrot.slane %v1734, %v1766
    %v1768 = vlaneseq
    %v1769 = vshrl.u32 %v1768, 7
    %v1770 = vsub.s32 2, %v1769
    %v1771 = vrot.slane %v1735, %v1770
    %v1772 = vmul.f32 %v1564, %v1759
    %v1773 = vmul.f32 %v1566, %v1763
    %v1774 = vmul.f32 %v1646, %v1767
    %v1775 = vmul.f32 %v1648, %v1771
    %v1776 = vlaneseq
    %v1777 = vshrl.u32 %v1776, 7
    %v1778 = vsub.s32 3, %v1777
    %v1779 = vrot.slane %v1752, %v1778
    %v1780 = vlaneseq
    %v1781 = vshrl.u32 %v1780, 7
    %v1782 = vsub.s32 3, %v1781
    %v1783 = vrot.slane %v1753, %v1782
    %v1784 = vlaneseq
    %v1785 = vshrl.u32 %v1784, 7
    %v1786 = vsub.s32 3, %v1785
    %v1787 = vrot.slane %v1754, %v1786
    %v1788 = vlaneseq
    %v1789 = vshrl.u32 %v1788, 7
    %v1790 = vsub.s32 3, %v1789
    %v1791 = vrot.slane %v1755, %v1790
    %v1792 = vadd.f32 %v1772, %v1779
    %v1793 = vadd.f32 %v1773, %v1783
    %v1794 = vadd.f32 %v1774, %v1787
    %v1795 = vadd.f32 %v1775, %v1791
    %vm1796 = vcmp.gt.f32.partialorder %v1792, 0.0
    %vm1797 = vcmp.gt.f32.partialorder %v1793, 0.0
    %vm1798 = vcmp.gt.f32.partialorder %v1794, 0.0
    %vm1799 = vcmp.gt.f32.partialorder %v1795, 0.0
    %v1800 = vmul.f32 %v1792, 0.01
    %v1801 = vmul.f32 %v1793, 0.01
    %v1802 = vmul.f32 %v1794, 0.01
    %v1803 = vmul.f32 %v1795, 0.01
    %v1804 = vsel %vm1796, %v1792, %v1800
    %v1805 = vsel %vm1797, %v1793, %v1801
    %v1806 = vsel %vm1798, %v1794, %v1802
    %v1807 = vsel %vm1799, %v1795, %v1803
    %v1808 = vpack.c.bf16 %v1804, %v1804
    %v1809 = vpack.c.bf16 %v1805, %v1805
    %v1810 = vpack.c.bf16 %v1806, %v1806
    %v1811 = vpack.c.bf16 %v1807, %v1807
    %v1812 = vld [vmem:[#allocation8] sm:$0xff]
    %v1813 = vld [vmem:[#allocation8 + $0x8] sm:$0xff]
    %v1814 = vld [vmem:[#allocation8 + $0x10] sm:$0xff]
    %v1815 = vld [vmem:[#allocation8 + $0x18] sm:$0xff]
    %v1816 = vld [vmem:[#allocation8 + $0x20] sm:$0xff]
    %v1817 = vld [vmem:[#allocation8 + $0x28] sm:$0xff]
    %v1818 = vld [vmem:[#allocation8 + $0x30] sm:$0xff]
    %v1819 = vld [vmem:[#allocation8 + $0x38] sm:$0xff]
    %v1820 = vld [vmem:[#allocation8 + $0x40] sm:$0xff]
    %v1821 = vld [vmem:[#allocation8 + $0x48] sm:$0xff]
    %v1822 = vld [vmem:[#allocation8 + $0x50] sm:$0xff]
    %v1823 = vld [vmem:[#allocation8 + $0x58] sm:$0xff]
    %v1824 = vld [vmem:[#allocation8 + $0x60] sm:$0xff]
    %v1825 = vld [vmem:[#allocation8 + $0x68] sm:$0xff]
    %v1826 = vld [vmem:[#allocation8 + $0x70] sm:$0xff]
    %v1827 = vld [vmem:[#allocation8 + $0x78] sm:$0xff]
    %v1828 = vld [vmem:[#allocation8 + $0x80] sm:$0xff]
    %v1829 = vld [vmem:[#allocation8 + $0x88] sm:$0xff]
    %v1830 = vld [vmem:[#allocation8 + $0x90] sm:$0xff]
    %v1831 = vld [vmem:[#allocation8 + $0x98] sm:$0xff]
    %v1832 = vld [vmem:[#allocation8 + $0xa0] sm:$0xff]
    %v1833 = vld [vmem:[#allocation8 + $0xa8] sm:$0xff]
    %v1834 = vld [vmem:[#allocation8 + $0xb0] sm:$0xff]
    %v1835 = vld [vmem:[#allocation8 + $0xb8] sm:$0xff]
    %v1836 = vld [vmem:[#allocation8 + $0xc0] sm:$0xff]
    %v1837 = vld [vmem:[#allocation8 + $0xc8] sm:$0xff]
    %v1838 = vld [vmem:[#allocation8 + $0xd0] sm:$0xff]
    %v1839 = vld [vmem:[#allocation8 + $0xd8] sm:$0xff]
    %v1840 = vld [vmem:[#allocation8 + $0xe0] sm:$0xff]
    %v1841 = vld [vmem:[#allocation8 + $0xe8] sm:$0xff]
    %v1842 = vld [vmem:[#allocation8 + $0xf0] sm:$0xff]
    %v1843 = vld [vmem:[#allocation8 + $0xf8] sm:$0xff]
    %v1844 = vld [vmem:[#allocation8 + $0x100] sm:$0xff]
    %v1845 = vld [vmem:[#allocation8 + $0x108] sm:$0xff]
    %v1846 = vld [vmem:[#allocation8 + $0x110] sm:$0xff]
    %v1847 = vld [vmem:[#allocation8 + $0x118] sm:$0xff]
    %v1848 = vld [vmem:[#allocation8 + $0x120] sm:$0xff]
    %v1849 = vld [vmem:[#allocation8 + $0x128] sm:$0xff]
    %v1850 = vld [vmem:[#allocation8 + $0x130] sm:$0xff]
    %v1851 = vld [vmem:[#allocation8 + $0x138] sm:$0xff]
    %v1852 = vld [vmem:[#allocation8 + $0x140] sm:$0xff]
    %v1853 = vld [vmem:[#allocation8 + $0x148] sm:$0xff]
    %v1854 = vld [vmem:[#allocation8 + $0x150] sm:$0xff]
    %v1855 = vld [vmem:[#allocation8 + $0x158] sm:$0xff]
    %v1856 = vld [vmem:[#allocation8 + $0x160] sm:$0xff]
    %v1857 = vld [vmem:[#allocation8 + $0x168] sm:$0xff]
    %v1858 = vld [vmem:[#allocation8 + $0x170] sm:$0xff]
    %v1859 = vld [vmem:[#allocation8 + $0x178] sm:$0xff]
    %v1860 = vld [vmem:[#allocation8 + $0x180] sm:$0xff]
    %v1861 = vld [vmem:[#allocation8 + $0x188] sm:$0xff]
    %v1862 = vld [vmem:[#allocation8 + $0x190] sm:$0xff]
    %v1863 = vld [vmem:[#allocation8 + $0x198] sm:$0xff]
    %v1864 = vld [vmem:[#allocation8 + $0x1a0] sm:$0xff]
    %v1865 = vld [vmem:[#allocation8 + $0x1a8] sm:$0xff]
    %v1866 = vld [vmem:[#allocation8 + $0x1b0] sm:$0xff]
    %v1867 = vld [vmem:[#allocation8 + $0x1b8] sm:$0xff]
    %v1868 = vld [vmem:[#allocation8 + $0x1c0] sm:$0xff]
    %v1869 = vld [vmem:[#allocation8 + $0x1c8] sm:$0xff]
    %v1870 = vld [vmem:[#allocation8 + $0x1d0] sm:$0xff]
    %v1871 = vld [vmem:[#allocation8 + $0x1d8] sm:$0xff]
    %v1872 = vld [vmem:[#allocation8 + $0x1e0] sm:$0xff]
    %v1873 = vld [vmem:[#allocation8 + $0x1e8] sm:$0xff]
    %v1874 = vld [vmem:[#allocation8 + $0x1f0] sm:$0xff]
    %v1875 = vld [vmem:[#allocation8 + $0x1f8] sm:$0xff]
    %v1876 = vld [vmem:[#allocation8 + $0x200] sm:$0xff]
    %v1877 = vld [vmem:[#allocation8 + $0x208] sm:$0xff]
    %v1878 = vld [vmem:[#allocation8 + $0x210] sm:$0xff]
    %v1879 = vld [vmem:[#allocation8 + $0x218] sm:$0xff]
    %v1880 = vld [vmem:[#allocation8 + $0x220] sm:$0xff]
    %v1881 = vld [vmem:[#allocation8 + $0x228] sm:$0xff]
    %v1882 = vld [vmem:[#allocation8 + $0x230] sm:$0xff]
    %v1883 = vld [vmem:[#allocation8 + $0x238] sm:$0xff]
    %v1884 = vld [vmem:[#allocation8 + $0x240] sm:$0xff]
    %v1885 = vld [vmem:[#allocation8 + $0x248] sm:$0xff]
    %v1886 = vld [vmem:[#allocation8 + $0x250] sm:$0xff]
    %v1887 = vld [vmem:[#allocation8 + $0x258] sm:$0xff]
    %v1888 = vld [vmem:[#allocation8 + $0x260] sm:$0xff]
    %v1889 = vld [vmem:[#allocation8 + $0x268] sm:$0xff]
    %v1890 = vld [vmem:[#allocation8 + $0x270] sm:$0xff]
    %v1891 = vld [vmem:[#allocation8 + $0x278] sm:$0xff]
    %v1892 = vld [vmem:[#allocation8 + $0x280] sm:$0xff]
    %v1893 = vld [vmem:[#allocation8 + $0x288] sm:$0xff]
    %v1894 = vld [vmem:[#allocation8 + $0x290] sm:$0xff]
    %v1895 = vld [vmem:[#allocation8 + $0x298] sm:$0xff]
    %v1896 = vld [vmem:[#allocation8 + $0x2a0] sm:$0xff]
    %v1897 = vld [vmem:[#allocation8 + $0x2a8] sm:$0xff]
    %v1898 = vld [vmem:[#allocation8 + $0x2b0] sm:$0xff]
    %v1899 = vld [vmem:[#allocation8 + $0x2b8] sm:$0xff]
    %v1900 = vld [vmem:[#allocation8 + $0x2c0] sm:$0xff]
    %v1901 = vld [vmem:[#allocation8 + $0x2c8] sm:$0xff]
    %v1902 = vld [vmem:[#allocation8 + $0x2d0] sm:$0xff]
    %v1903 = vld [vmem:[#allocation8 + $0x2d8] sm:$0xff]
    %v1904 = vld [vmem:[#allocation8 + $0x2e0] sm:$0xff]
    %v1905 = vld [vmem:[#allocation8 + $0x2e8] sm:$0xff]
    %v1906 = vld [vmem:[#allocation8 + $0x2f0] sm:$0xff]
    %v1907 = vld [vmem:[#allocation8 + $0x2f8] sm:$0xff]
    %v1908 = vld [vmem:[#allocation8 + $0x300] sm:$0xff]
    %v1909 = vld [vmem:[#allocation8 + $0x308] sm:$0xff]
    %v1910 = vld [vmem:[#allocation8 + $0x310] sm:$0xff]
    %v1911 = vld [vmem:[#allocation8 + $0x318] sm:$0xff]
    %v1912 = vld [vmem:[#allocation8 + $0x320] sm:$0xff]
    %v1913 = vld [vmem:[#allocation8 + $0x328] sm:$0xff]
    %v1914 = vld [vmem:[#allocation8 + $0x330] sm:$0xff]
    %v1915 = vld [vmem:[#allocation8 + $0x338] sm:$0xff]
    %v1916 = vld [vmem:[#allocation8 + $0x340] sm:$0xff]
    %v1917 = vld [vmem:[#allocation8 + $0x348] sm:$0xff]
    %v1918 = vld [vmem:[#allocation8 + $0x350] sm:$0xff]
    %v1919 = vld [vmem:[#allocation8 + $0x358] sm:$0xff]
    %v1920 = vld [vmem:[#allocation8 + $0x360] sm:$0xff]
    %v1921 = vld [vmem:[#allocation8 + $0x368] sm:$0xff]
    %v1922 = vld [vmem:[#allocation8 + $0x370] sm:$0xff]
    %v1923 = vld [vmem:[#allocation8 + $0x378] sm:$0xff]
    %v1924 = vld [vmem:[#allocation8 + $0x380] sm:$0xff]
    %v1925 = vld [vmem:[#allocation8 + $0x388] sm:$0xff]
    %v1926 = vld [vmem:[#allocation8 + $0x390] sm:$0xff]
    %v1927 = vld [vmem:[#allocation8 + $0x398] sm:$0xff]
    %v1928 = vld [vmem:[#allocation8 + $0x3a0] sm:$0xff]
    %v1929 = vld [vmem:[#allocation8 + $0x3a8] sm:$0xff]
    %v1930 = vld [vmem:[#allocation8 + $0x3b0] sm:$0xff]
    %v1931 = vld [vmem:[#allocation8 + $0x3b8] sm:$0xff]
    %v1932 = vld [vmem:[#allocation8 + $0x3c0] sm:$0xff]
    %v1933 = vld [vmem:[#allocation8 + $0x3c8] sm:$0xff]
    %v1934 = vld [vmem:[#allocation8 + $0x3d0] sm:$0xff]
    %v1935 = vld [vmem:[#allocation8 + $0x3d8] sm:$0xff]
    %v1936 = vld [vmem:[#allocation8 + $0x3e0] sm:$0xff]
    %v1937 = vld [vmem:[#allocation8 + $0x3e8] sm:$0xff]
    %v1938 = vld [vmem:[#allocation8 + $0x3f0] sm:$0xff]
    %v1939 = vld [vmem:[#allocation8 + $0x3f8] sm:$0xff]
    %v1940 = vlaneseq
    %v1941 = vshrl.u32 %v1940, 7
    %v1942 = vsub.s32 4, %v1941
    %v1943 = vrot.slane %v89, %v1942
    %v1944 = vlaneseq
    %v1945 = vshrl.u32 %v1944, 7
    %v1946 = vsub.s32 4, %v1945
    %v1947 = vrot.slane %v90, %v1946
    %v1948 = vlaneseq
    %v1949 = vshrl.u32 %v1948, 7
    %v1950 = vsub.s32 4, %v1949
    %v1951 = vrot.slane %v91, %v1950
    %v1952 = vlaneseq
    %v1953 = vshrl.u32 %v1952, 7
    %v1954 = vsub.s32 4, %v1953
    %v1955 = vrot.slane %v92, %v1954
    %v2084 = vunpack.c.l.b16 %v1812
    %v2085 = vunpack.c.h.b16 %v1812
    %v2086 = vunpack.c.l.b16 %v1813
    %v2087 = vunpack.c.h.b16 %v1813
    %v2088 = vunpack.c.l.b16 %v1814
    %v2089 = vunpack.c.h.b16 %v1814
    %v2090 = vunpack.c.l.b16 %v1815
    %v2091 = vunpack.c.h.b16 %v1815
    %v2092 = vunpack.c.l.b16 %v1816
    %v2093 = vunpack.c.h.b16 %v1816
    %v2094 = vunpack.c.l.b16 %v1817
    %v2095 = vunpack.c.h.b16 %v1817
    %v2096 = vunpack.c.l.b16 %v1818
    %v2097 = vunpack.c.h.b16 %v1818
    %v2098 = vunpack.c.l.b16 %v1819
    %v2099 = vunpack.c.h.b16 %v1819
    %v2100 = vunpack.c.l.b16 %v1820
    %v2101 = vunpack.c.h.b16 %v1820
    %v2102 = vunpack.c.l.b16 %v1821
    %v2103 = vunpack.c.h.b16 %v1821
    %v2104 = vunpack.c.l.b16 %v1822
    %v2105 = vunpack.c.h.b16 %v1822
    %v2106 = vunpack.c.l.b16 %v1823
    %v2107 = vunpack.c.h.b16 %v1823
    %v2108 = vunpack.c.l.b16 %v1824
    %v2109 = vunpack.c.h.b16 %v1824
    %v2110 = vunpack.c.l.b16 %v1825
    %v2111 = vunpack.c.h.b16 %v1825
    %v2112 = vunpack.c.l.b16 %v1826
    %v2113 = vunpack.c.h.b16 %v1826
    %v2114 = vunpack.c.l.b16 %v1827
    %v2115 = vunpack.c.h.b16 %v1827
    %v2116 = vunpack.c.l.b16 %v1828
    %v2117 = vunpack.c.h.b16 %v1828
    %v2118 = vunpack.c.l.b16 %v1829
    %v2119 = vunpack.c.h.b16 %v1829
    %v2120 = vunpack.c.l.b16 %v1830
    %v2121 = vunpack.c.h.b16 %v1830
    %v2122 = vunpack.c.l.b16 %v1831
    %v2123 = vunpack.c.h.b16 %v1831
    %v2124 = vunpack.c.l.b16 %v1832
    %v2125 = vunpack.c.h.b16 %v1832
    %v2126 = vunpack.c.l.b16 %v1833
    %v2127 = vunpack.c.h.b16 %v1833
    %v2128 = vunpack.c.l.b16 %v1834
    %v2129 = vunpack.c.h.b16 %v1834
    %v2130 = vunpack.c.l.b16 %v1835
    %v2131 = vunpack.c.h.b16 %v1835
    %v2132 = vunpack.c.l.b16 %v1836
    %v2133 = vunpack.c.h.b16 %v1836
    %v2134 = vunpack.c.l.b16 %v1837
    %v2135 = vunpack.c.h.b16 %v1837
    %v2136 = vunpack.c.l.b16 %v1838
    %v2137 = vunpack.c.h.b16 %v1838
    %v2138 = vunpack.c.l.b16 %v1839
    %v2139 = vunpack.c.h.b16 %v1839
    %v2140 = vunpack.c.l.b16 %v1840
    %v2141 = vunpack.c.h.b16 %v1840
    %v2142 = vunpack.c.l.b16 %v1841
    %v2143 = vunpack.c.h.b16 %v1841
    %v2144 = vunpack.c.l.b16 %v1842
    %v2145 = vunpack.c.h.b16 %v1842
    %v2146 = vunpack.c.l.b16 %v1843
    %v2147 = vunpack.c.h.b16 %v1843
    %v2148 = vunpack.c.l.b16 %v1844
    %v2149 = vunpack.c.h.b16 %v1844
    %v2150 = vunpack.c.l.b16 %v1845
    %v2151 = vunpack.c.h.b16 %v1845
    %v2152 = vunpack.c.l.b16 %v1846
    %v2153 = vunpack.c.h.b16 %v1846
    %v2154 = vunpack.c.l.b16 %v1847
    %v2155 = vunpack.c.h.b16 %v1847
    %v2156 = vunpack.c.l.b16 %v1848
    %v2157 = vunpack.c.h.b16 %v1848
    %v2158 = vunpack.c.l.b16 %v1849
    %v2159 = vunpack.c.h.b16 %v1849
    %v2160 = vunpack.c.l.b16 %v1850
    %v2161 = vunpack.c.h.b16 %v1850
    %v2162 = vunpack.c.l.b16 %v1851
    %v2163 = vunpack.c.h.b16 %v1851
    %v2164 = vunpack.c.l.b16 %v1852
    %v2165 = vunpack.c.h.b16 %v1852
    %v2166 = vunpack.c.l.b16 %v1853
    %v2167 = vunpack.c.h.b16 %v1853
    %v2168 = vunpack.c.l.b16 %v1854
    %v2169 = vunpack.c.h.b16 %v1854
    %v2170 = vunpack.c.l.b16 %v1855
    %v2171 = vunpack.c.h.b16 %v1855
    %v2172 = vunpack.c.l.b16 %v1856
    %v2173 = vunpack.c.h.b16 %v1856
    %v2174 = vunpack.c.l.b16 %v1857
    %v2175 = vunpack.c.h.b16 %v1857
    %v2176 = vunpack.c.l.b16 %v1858
    %v2177 = vunpack.c.h.b16 %v1858
    %v2178 = vunpack.c.l.b16 %v1859
    %v2179 = vunpack.c.h.b16 %v1859
    %v2180 = vunpack.c.l.b16 %v1860
    %v2181 = vunpack.c.h.b16 %v1860
    %v2182 = vunpack.c.l.b16 %v1861
    %v2183 = vunpack.c.h.b16 %v1861
    %v2184 = vunpack.c.l.b16 %v1862
    %v2185 = vunpack.c.h.b16 %v1862
    %v2186 = vunpack.c.l.b16 %v1863
    %v2187 = vunpack.c.h.b16 %v1863
    %v2188 = vunpack.c.l.b16 %v1864
    %v2189 = vunpack.c.h.b16 %v1864
    %v2190 = vunpack.c.l.b16 %v1865
    %v2191 = vunpack.c.h.b16 %v1865
    %v2192 = vunpack.c.l.b16 %v1866
    %v2193 = vunpack.c.h.b16 %v1866
    %v2194 = vunpack.c.l.b16 %v1867
    %v2195 = vunpack.c.h.b16 %v1867
    %v2196 = vunpack.c.l.b16 %v1868
    %v2197 = vunpack.c.h.b16 %v1868
    %v2198 = vunpack.c.l.b16 %v1869
    %v2199 = vunpack.c.h.b16 %v1869
    %v2200 = vunpack.c.l.b16 %v1870
    %v2201 = vunpack.c.h.b16 %v1870
    %v2202 = vunpack.c.l.b16 %v1871
    %v2203 = vunpack.c.h.b16 %v1871
    %v2204 = vunpack.c.l.b16 %v1872
    %v2205 = vunpack.c.h.b16 %v1872
    %v2206 = vunpack.c.l.b16 %v1873
    %v2207 = vunpack.c.h.b16 %v1873
    %v2208 = vunpack.c.l.b16 %v1874
    %v2209 = vunpack.c.h.b16 %v1874
    %v2210 = vunpack.c.l.b16 %v1875
    %v2211 = vunpack.c.h.b16 %v1875
    %v2212 = vunpack.c.l.b16 %v1876
    %v2213 = vunpack.c.h.b16 %v1876
    %v2214 = vunpack.c.l.b16 %v1877
    %v2215 = vunpack.c.h.b16 %v1877
    %v2216 = vunpack.c.l.b16 %v1878
    %v2217 = vunpack.c.h.b16 %v1878
    %v2218 = vunpack.c.l.b16 %v1879
    %v2219 = vunpack.c.h.b16 %v1879
    %v2220 = vunpack.c.l.b16 %v1880
    %v2221 = vunpack.c.h.b16 %v1880
    %v2222 = vunpack.c.l.b16 %v1881
    %v2223 = vunpack.c.h.b16 %v1881
    %v2224 = vunpack.c.l.b16 %v1882
    %v2225 = vunpack.c.h.b16 %v1882
    %v2226 = vunpack.c.l.b16 %v1883
    %v2227 = vunpack.c.h.b16 %v1883
    %v2228 = vunpack.c.l.b16 %v1884
    %v2229 = vunpack.c.h.b16 %v1884
    %v2230 = vunpack.c.l.b16 %v1885
    %v2231 = vunpack.c.h.b16 %v1885
    %v2232 = vunpack.c.l.b16 %v1886
    %v2233 = vunpack.c.h.b16 %v1886
    %v2234 = vunpack.c.l.b16 %v1887
    %v2235 = vunpack.c.h.b16 %v1887
    %v2236 = vunpack.c.l.b16 %v1888
    %v2237 = vunpack.c.h.b16 %v1888
    %v2238 = vunpack.c.l.b16 %v1889
    %v2239 = vunpack.c.h.b16 %v1889
    %v2240 = vunpack.c.l.b16 %v1890
    %v2241 = vunpack.c.h.b16 %v1890
    %v2242 = vunpack.c.l.b16 %v1891
    %v2243 = vunpack.c.h.b16 %v1891
    %v2244 = vunpack.c.l.b16 %v1892
    %v2245 = vunpack.c.h.b16 %v1892
    %v2246 = vunpack.c.l.b16 %v1893
    %v2247 = vunpack.c.h.b16 %v1893
    %v2248 = vunpack.c.l.b16 %v1894
    %v2249 = vunpack.c.h.b16 %v1894
    %v2250 = vunpack.c.l.b16 %v1895
    %v2251 = vunpack.c.h.b16 %v1895
    %v2252 = vunpack.c.l.b16 %v1896
    %v2253 = vunpack.c.h.b16 %v1896
    %v2254 = vunpack.c.l.b16 %v1897
    %v2255 = vunpack.c.h.b16 %v1897
    %v2256 = vunpack.c.l.b16 %v1898
    %v2257 = vunpack.c.h.b16 %v1898
    %v2258 = vunpack.c.l.b16 %v1899
    %v2259 = vunpack.c.h.b16 %v1899
    %v2260 = vunpack.c.l.b16 %v1900
    %v2261 = vunpack.c.h.b16 %v1900
    %v2262 = vunpack.c.l.b16 %v1901
    %v2263 = vunpack.c.h.b16 %v1901
    %v2264 = vunpack.c.l.b16 %v1902
    %v2265 = vunpack.c.h.b16 %v1902
    %v2266 = vunpack.c.l.b16 %v1903
    %v2267 = vunpack.c.h.b16 %v1903
    %v2268 = vunpack.c.l.b16 %v1904
    %v2269 = vunpack.c.h.b16 %v1904
    %v2270 = vunpack.c.l.b16 %v1905
    %v2271 = vunpack.c.h.b16 %v1905
    %v2272 = vunpack.c.l.b16 %v1906
    %v2273 = vunpack.c.h.b16 %v1906
    %v2274 = vunpack.c.l.b16 %v1907
    %v2275 = vunpack.c.h.b16 %v1907
    %v2276 = vunpack.c.l.b16 %v1908
    %v2277 = vunpack.c.h.b16 %v1908
    %v2278 = vunpack.c.l.b16 %v1909
    %v2279 = vunpack.c.h.b16 %v1909
    %v2280 = vunpack.c.l.b16 %v1910
    %v2281 = vunpack.c.h.b16 %v1910
    %v2282 = vunpack.c.l.b16 %v1911
    %v2283 = vunpack.c.h.b16 %v1911
    %v2284 = vunpack.c.l.b16 %v1912
    %v2285 = vunpack.c.h.b16 %v1912
    %v2286 = vunpack.c.l.b16 %v1913
    %v2287 = vunpack.c.h.b16 %v1913
    %v2288 = vunpack.c.l.b16 %v1914
    %v2289 = vunpack.c.h.b16 %v1914
    %v2290 = vunpack.c.l.b16 %v1915
    %v2291 = vunpack.c.h.b16 %v1915
    %v2292 = vunpack.c.l.b16 %v1916
    %v2293 = vunpack.c.h.b16 %v1916
    %v2294 = vunpack.c.l.b16 %v1917
    %v2295 = vunpack.c.h.b16 %v1917
    %v2296 = vunpack.c.l.b16 %v1918
    %v2297 = vunpack.c.h.b16 %v1918
    %v2298 = vunpack.c.l.b16 %v1919
    %v2299 = vunpack.c.h.b16 %v1919
    %v2300 = vunpack.c.l.b16 %v1920
    %v2301 = vunpack.c.h.b16 %v1920
    %v2302 = vunpack.c.l.b16 %v1921
    %v2303 = vunpack.c.h.b16 %v1921
    %v2304 = vunpack.c.l.b16 %v1922
    %v2305 = vunpack.c.h.b16 %v1922
    %v2306 = vunpack.c.l.b16 %v1923
    %v2307 = vunpack.c.h.b16 %v1923
    %v2308 = vunpack.c.l.b16 %v1924
    %v2309 = vunpack.c.h.b16 %v1924
    %v2310 = vunpack.c.l.b16 %v1925
    %v2311 = vunpack.c.h.b16 %v1925
    %v2312 = vunpack.c.l.b16 %v1926
    %v2313 = vunpack.c.h.b16 %v1926
    %v2314 = vunpack.c.l.b16 %v1927
    %v2315 = vunpack.c.h.b16 %v1927
    %v2316 = vunpack.c.l.b16 %v1928
    %v2317 = vunpack.c.h.b16 %v1928
    %v2318 = vunpack.c.l.b16 %v1929
    %v2319 = vunpack.c.h.b16 %v1929
    %v2320 = vunpack.c.l.b16 %v1930
    %v2321 = vunpack.c.h.b16 %v1930
    %v2322 = vunpack.c.l.b16 %v1931
    %v2323 = vunpack.c.h.b16 %v1931
    %v2324 = vunpack.c.l.b16 %v1932
    %v2325 = vunpack.c.h.b16 %v1932
    %v2326 = vunpack.c.l.b16 %v1933
    %v2327 = vunpack.c.h.b16 %v1933
    %v2328 = vunpack.c.l.b16 %v1934
    %v2329 = vunpack.c.h.b16 %v1934
    %v2330 = vunpack.c.l.b16 %v1935
    %v2331 = vunpack.c.h.b16 %v1935
    %v2332 = vunpack.c.l.b16 %v1936
    %v2333 = vunpack.c.h.b16 %v1936
    %v2334 = vunpack.c.l.b16 %v1937
    %v2335 = vunpack.c.h.b16 %v1937
    %v2336 = vunpack.c.l.b16 %v1938
    %v2337 = vunpack.c.h.b16 %v1938
    %v2338 = vunpack.c.l.b16 %v1939
    %v2339 = vunpack.c.h.b16 %v1939
    %v2340 = vpack.c.b16 %v2088, %v2084
    %v2341 = vpack.c.b16 %v2089, %v2085
    %v2342 = vpack.c.b16 %v2090, %v2086
    %v2343 = vpack.c.b16 %v2091, %v2087
    %v2344 = vpack.c.b16 %v2096, %v2092
    %v2345 = vpack.c.b16 %v2097, %v2093
    %v2346 = vpack.c.b16 %v2098, %v2094
    %v2347 = vpack.c.b16 %v2099, %v2095
    %v2348 = vpack.c.b16 %v2104, %v2100
    %v2349 = vpack.c.b16 %v2105, %v2101
    %v2350 = vpack.c.b16 %v2106, %v2102
    %v2351 = vpack.c.b16 %v2107, %v2103
    %v2352 = vpack.c.b16 %v2112, %v2108
    %v2353 = vpack.c.b16 %v2113, %v2109
    %v2354 = vpack.c.b16 %v2114, %v2110
    %v2355 = vpack.c.b16 %v2115, %v2111
    %v2356 = vpack.c.b16 %v2120, %v2116
    %v2357 = vpack.c.b16 %v2121, %v2117
    %v2358 = vpack.c.b16 %v2122, %v2118
    %v2359 = vpack.c.b16 %v2123, %v2119
    %v2360 = vpack.c.b16 %v2128, %v2124
    %v2361 = vpack.c.b16 %v2129, %v2125
    %v2362 = vpack.c.b16 %v2130, %v2126
    %v2363 = vpack.c.b16 %v2131, %v2127
    %v2364 = vpack.c.b16 %v2136, %v2132
    %v2365 = vpack.c.b16 %v2137, %v2133
    %v2366 = vpack.c.b16 %v2138, %v2134
    %v2367 = vpack.c.b16 %v2139, %v2135
    %v2368 = vpack.c.b16 %v2144, %v2140
    %v2369 = vpack.c.b16 %v2145, %v2141
    %v2370 = vpack.c.b16 %v2146, %v2142
    %v2371 = vpack.c.b16 %v2147, %v2143
    %v2372 = vpack.c.b16 %v2152, %v2148
    %v2373 = vpack.c.b16 %v2153, %v2149
    %v2374 = vpack.c.b16 %v2154, %v2150
    %v2375 = vpack.c.b16 %v2155, %v2151
    %v2376 = vpack.c.b16 %v2160, %v2156
    %v2377 = vpack.c.b16 %v2161, %v2157
    %v2378 = vpack.c.b16 %v2162, %v2158
    %v2379 = vpack.c.b16 %v2163, %v2159
    %v2380 = vpack.c.b16 %v2168, %v2164
    %v2381 = vpack.c.b16 %v2169, %v2165
    %v2382 = vpack.c.b16 %v2170, %v2166
    %v2383 = vpack.c.b16 %v2171, %v2167
    %v2384 = vpack.c.b16 %v2176, %v2172
    %v2385 = vpack.c.b16 %v2177, %v2173
    %v2386 = vpack.c.b16 %v2178, %v2174
    %v2387 = vpack.c.b16 %v2179, %v2175
    %v2388 = vpack.c.b16 %v2184, %v2180
    %v2389 = vpack.c.b16 %v2185, %v2181
    %v2390 = vpack.c.b16 %v2186, %v2182
    %v2391 = vpack.c.b16 %v2187, %v2183
    %v2392 = vpack.c.b16 %v2192, %v2188
    %v2393 = vpack.c.b16 %v2193, %v2189
    %v2394 = vpack.c.b16 %v2194, %v2190
    %v2395 = vpack.c.b16 %v2195, %v2191
    %v2396 = vpack.c.b16 %v2200, %v2196
    %v2397 = vpack.c.b16 %v2201, %v2197
    %v2398 = vpack.c.b16 %v2202, %v2198
    %v2399 = vpack.c.b16 %v2203, %v2199
    %v2400 = vpack.c.b16 %v2208, %v2204
    %v2401 = vpack.c.b16 %v2209, %v2205
    %v2402 = vpack.c.b16 %v2210, %v2206
    %v2403 = vpack.c.b16 %v2211, %v2207
    %v2404 = vpack.c.b16 %v2216, %v2212
    %v2405 = vpack.c.b16 %v2217, %v2213
    %v2406 = vpack.c.b16 %v2218, %v2214
    %v2407 = vpack.c.b16 %v2219, %v2215
    %v2408 = vpack.c.b16 %v2224, %v2220
    %v2409 = vpack.c.b16 %v2225, %v2221
    %v2410 = vpack.c.b16 %v2226, %v2222
    %v2411 = vpack.c.b16 %v2227, %v2223
    %v2412 = vpack.c.b16 %v2232, %v2228
    %v2413 = vpack.c.b16 %v2233, %v2229
    %v2414 = vpack.c.b16 %v2234, %v2230
    %v2415 = vpack.c.b16 %v2235, %v2231
    %v2416 = vpack.c.b16 %v2240, %v2236
    %v2417 = vpack.c.b16 %v2241, %v2237
    %v2418 = vpack.c.b16 %v2242, %v2238
    %v2419 = vpack.c.b16 %v2243, %v2239
    %v2420 = vpack.c.b16 %v2248, %v2244
    %v2421 = vpack.c.b16 %v2249, %v2245
    %v2422 = vpack.c.b16 %v2250, %v2246
    %v2423 = vpack.c.b16 %v2251, %v2247
    %v2424 = vpack.c.b16 %v2256, %v2252
    %v2425 = vpack.c.b16 %v2257, %v2253
    %v2426 = vpack.c.b16 %v2258, %v2254
    %v2427 = vpack.c.b16 %v2259, %v2255
    %v2428 = vpack.c.b16 %v2264, %v2260
    %v2429 = vpack.c.b16 %v2265, %v2261
    %v2430 = vpack.c.b16 %v2266, %v2262
    %v2431 = vpack.c.b16 %v2267, %v2263
    %v2432 = vpack.c.b16 %v2272, %v2268
    %v2433 = vpack.c.b16 %v2273, %v2269
    %v2434 = vpack.c.b16 %v2274, %v2270
    %v2435 = vpack.c.b16 %v2275, %v2271
    %v2436 = vpack.c.b16 %v2280, %v2276
    %v2437 = vpack.c.b16 %v2281, %v2277
    %v2438 = vpack.c.b16 %v2282, %v2278
    %v2439 = vpack.c.b16 %v2283, %v2279
    %v2440 = vpack.c.b16 %v2288, %v2284
    %v2441 = vpack.c.b16 %v2289, %v2285
    %v2442 = vpack.c.b16 %v2290, %v2286
    %v2443 = vpack.c.b16 %v2291, %v2287
    %v2444 = vpack.c.b16 %v2296, %v2292
    %v2445 = vpack.c.b16 %v2297, %v2293
    %v2446 = vpack.c.b16 %v2298, %v2294
    %v2447 = vpack.c.b16 %v2299, %v2295
    %v2448 = vpack.c.b16 %v2304, %v2300
    %v2449 = vpack.c.b16 %v2305, %v2301
    %v2450 = vpack.c.b16 %v2306, %v2302
    %v2451 = vpack.c.b16 %v2307, %v2303
    %v2452 = vpack.c.b16 %v2312, %v2308
    %v2453 = vpack.c.b16 %v2313, %v2309
    %v2454 = vpack.c.b16 %v2314, %v2310
    %v2455 = vpack.c.b16 %v2315, %v2311
    %v2456 = vpack.c.b16 %v2320, %v2316
    %v2457 = vpack.c.b16 %v2321, %v2317
    %v2458 = vpack.c.b16 %v2322, %v2318
    %v2459 = vpack.c.b16 %v2323, %v2319
    %v2460 = vpack.c.b16 %v2328, %v2324
    %v2461 = vpack.c.b16 %v2329, %v2325
    %v2462 = vpack.c.b16 %v2330, %v2326
    %v2463 = vpack.c.b16 %v2331, %v2327
    %v2464 = vpack.c.b16 %v2336, %v2332
    %v2465 = vpack.c.b16 %v2337, %v2333
    %v2466 = vpack.c.b16 %v2338, %v2334
    %v2467 = vpack.c.b16 %v2339, %v2335
    %2596 = vmatprep.subr.bf16.mxu0 %v2369
    %2597 = vmatpush1.bf16.msra.mxu0 %v2368
    %2598 = vmatprep.subr.bf16.mxu0 %v2365
    %2599 = vmatpush1.bf16.msra.mxu0 %v2364
    %2600 = vmatprep.subr.bf16.mxu0 %v2361
    %2601 = vmatpush1.bf16.msra.mxu0 %v2360
    %2602 = vmatprep.subr.bf16.mxu0 %v2357
    %2603 = vmatpush1.bf16.msra.mxu0 %v2356
    %2604 = vmatprep.subr.bf16.mxu0 %v2353
    %2605 = vmatpush1.bf16.msra.mxu0 %v2352
    %2606 = vmatprep.subr.bf16.mxu0 %v2349
    %2607 = vmatpush1.bf16.msra.mxu0 %v2348
    %2608 = vmatprep.subr.bf16.mxu0 %v2345
    %2609 = vmatpush1.bf16.msra.mxu0 %v2344
    %2610 = vmatprep.subr.bf16.mxu0 %v2341
    %2611 = vmatpush1.bf16.msra.mxu0 %v2340
    %2612 = vmatprep.subr.bf16.mxu0 %v2401
    %2613 = vmatpush2.bf16.msra.mxu0 %v2400
    %2614 = vmatprep.subr.bf16.mxu0 %v2397
    %2615 = vmatpush2.bf16.msra.mxu0 %v2396
    %2616 = vmatprep.subr.bf16.mxu0 %v2393
    %2617 = vmatpush2.bf16.msra.mxu0 %v2392
    %2618 = vmatprep.subr.bf16.mxu0 %v2389
    %2619 = vmatpush2.bf16.msra.mxu0 %v2388
    %2620 = vmatprep.subr.bf16.mxu0 %v2385
    %2621 = vmatpush2.bf16.msra.mxu0 %v2384
    %2622 = vmatprep.subr.bf16.mxu0 %v2381
    %2623 = vmatpush2.bf16.msra.mxu0 %v2380
    %2624 = vmatprep.subr.bf16.mxu0 %v2377
    %2625 = vmatpush2.bf16.msra.mxu0 %v2376
    %2626 = vmatprep.subr.bf16.mxu0 %v2373
    %2627 = vmatpush2.bf16.msra.mxu0 %v2372
    %2628 = vmatprep.mubr.bf16.mxu0 %v1809
    %2629 = vmatmul.mubr.bf16.gmra.mxu0 %v1808
    %v2630 = vpop.f32.mrf.mxu0
    %v2631 = vadd.f32 %v1943, %v2630
    %v2632 = vpop.f32.mrf.mxu0
    %v2633 = vadd.f32 %v1947, %v2632
    %v2634 = vpop.f32.mrf.mxu0
    %v2635 = vpop.f32.mrf.mxu0
    %2636 = vdwg.mxu0
    %2637 = vmatprep.subr.bf16.mxu0 %v2433
    %2638 = vmatpush1.bf16.msra.mxu0 %v2432
    %2639 = vmatprep.subr.bf16.mxu0 %v2429
    %2640 = vmatpush1.bf16.msra.mxu0 %v2428
    %2641 = vmatprep.subr.bf16.mxu0 %v2425
    %2642 = vmatpush1.bf16.msra.mxu0 %v2424
    %2643 = vmatprep.subr.bf16.mxu0 %v2421
    %2644 = vmatpush1.bf16.msra.mxu0 %v2420
    %2645 = vmatprep.subr.bf16.mxu0 %v2417
    %2646 = vmatpush1.bf16.msra.mxu0 %v2416
    %2647 = vmatprep.subr.bf16.mxu0 %v2413
    %2648 = vmatpush1.bf16.msra.mxu0 %v2412
    %2649 = vmatprep.subr.bf16.mxu0 %v2409
    %2650 = vmatpush1.bf16.msra.mxu0 %v2408
    %2651 = vmatprep.subr.bf16.mxu0 %v2405
    %2652 = vmatpush1.bf16.msra.mxu0 %v2404
    %2653 = vmatprep.subr.bf16.mxu0 %v2465
    %2654 = vmatpush2.bf16.msra.mxu0 %v2464
    %2655 = vmatprep.subr.bf16.mxu0 %v2461
    %2656 = vmatpush2.bf16.msra.mxu0 %v2460
    %2657 = vmatprep.subr.bf16.mxu0 %v2457
    %2658 = vmatpush2.bf16.msra.mxu0 %v2456
    %2659 = vmatprep.subr.bf16.mxu0 %v2453
    %2660 = vmatpush2.bf16.msra.mxu0 %v2452
    %2661 = vmatprep.subr.bf16.mxu0 %v2449
    %2662 = vmatpush2.bf16.msra.mxu0 %v2448
    %2663 = vmatprep.subr.bf16.mxu0 %v2445
    %2664 = vmatpush2.bf16.msra.mxu0 %v2444
    %2665 = vmatprep.subr.bf16.mxu0 %v2441
    %2666 = vmatpush2.bf16.msra.mxu0 %v2440
    %2667 = vmatprep.subr.bf16.mxu0 %v2437
    %2668 = vmatpush2.bf16.msra.mxu0 %v2436
    %2669 = vmatprep.mubr.bf16.mxu0 %v1811
    %2670 = vmatmul.mubr.bf16.gmra.mxu0 %v1810
    %v2671 = vpop.f32.mrf.mxu0
    %v2672 = vadd.f32 %v2631, %v2671
    %v2673 = vpop.f32.mrf.mxu0
    %v2674 = vadd.f32 %v2633, %v2673
    %v2675 = vpop.f32.mrf.mxu0
    %v2676 = vpop.f32.mrf.mxu0
    %2677 = vdwg.mxu0
    %2678 = vmatprep.subr.bf16.mxu0 %v2371
    %2679 = vmatpush1.bf16.msra.mxu0 %v2370
    %2680 = vmatprep.subr.bf16.mxu0 %v2367
    %2681 = vmatpush1.bf16.msra.mxu0 %v2366
    %2682 = vmatprep.subr.bf16.mxu0 %v2363
    %2683 = vmatpush1.bf16.msra.mxu0 %v2362
    %2684 = vmatprep.subr.bf16.mxu0 %v2359
    %2685 = vmatpush1.bf16.msra.mxu0 %v2358
    %2686 = vmatprep.subr.bf16.mxu0 %v2355
    %2687 = vmatpush1.bf16.msra.mxu0 %v2354
    %2688 = vmatprep.subr.bf16.mxu0 %v2351
    %2689 = vmatpush1.bf16.msra.mxu0 %v2350
    %2690 = vmatprep.subr.bf16.mxu0 %v2347
    %2691 = vmatpush1.bf16.msra.mxu0 %v2346
    %2692 = vmatprep.subr.bf16.mxu0 %v2343
    %2693 = vmatpush1.bf16.msra.mxu0 %v2342
    %2694 = vmatprep.subr.bf16.mxu0 %v2403
    %2695 = vmatpush2.bf16.msra.mxu0 %v2402
    %2696 = vmatprep.subr.bf16.mxu0 %v2399
    %2697 = vmatpush2.bf16.msra.mxu0 %v2398
    %2698 = vmatprep.subr.bf16.mxu0 %v2395
    %2699 = vmatpush2.bf16.msra.mxu0 %v2394
    %2700 = vmatprep.subr.bf16.mxu0 %v2391
    %2701 = vmatpush2.bf16.msra.mxu0 %v2390
    %2702 = vmatprep.subr.bf16.mxu0 %v2387
    %2703 = vmatpush2.bf16.msra.mxu0 %v2386
    %2704 = vmatprep.subr.bf16.mxu0 %v2383
    %2705 = vmatpush2.bf16.msra.mxu0 %v2382
    %2706 = vmatprep.subr.bf16.mxu0 %v2379
    %2707 = vmatpush2.bf16.msra.mxu0 %v2378
    %2708 = vmatprep.subr.bf16.mxu0 %v2375
    %2709 = vmatpush2.bf16.msra.mxu0 %v2374
    %2710 = vmatprep.mubr.bf16.mxu0 %v1809
    %2711 = vmatmul.mubr.bf16.gmra.mxu0 %v1808
    %v2712 = vpop.f32.mrf.mxu0
    %v2713 = vadd.f32 %v1951, %v2712
    %v2714 = vpop.f32.mrf.mxu0
    %v2715 = vadd.f32 %v1955, %v2714
    %v2716 = vpop.f32.mrf.mxu0
    %v2717 = vpop.f32.mrf.mxu0
    %2718 = vdwg.mxu0
    %2719 = vmatprep.subr.bf16.mxu0 %v2435
    %2720 = vmatpush1.bf16.msra.mxu0 %v2434
    %2721 = vmatprep.subr.bf16.mxu0 %v2431
    %2722 = vmatpush1.bf16.msra.mxu0 %v2430
    %2723 = vmatprep.subr.bf16.mxu0 %v2427
    %2724 = vmatpush1.bf16.msra.mxu0 %v2426
    %2725 = vmatprep.subr.bf16.mxu0 %v2423
    %2726 = vmatpush1.bf16.msra.mxu0 %v2422
    %2727 = vmatprep.subr.bf16.mxu0 %v2419
    %2728 = vmatpush1.bf16.msra.mxu0 %v2418
    %2729 = vmatprep.subr.bf16.mxu0 %v2415
    %2730 = vmatpush1.bf16.msra.mxu0 %v2414
    %2731 = vmatprep.subr.bf16.mxu0 %v2411
    %2732 = vmatpush1.bf16.msra.mxu0 %v2410
    %2733 = vmatprep.subr.bf16.mxu0 %v2407
    %2734 = vmatpush1.bf16.msra.mxu0 %v2406
    %2735 = vmatprep.subr.bf16.mxu0 %v2467
    %2736 = vmatpush2.bf16.msra.mxu0 %v2466
    %2737 = vmatprep.subr.bf16.mxu0 %v2463
    %2738 = vmatpush2.bf16.msra.mxu0 %v2462
    %2739 = vmatprep.subr.bf16.mxu0 %v2459
    %2740 = vmatpush2.bf16.msra.mxu0 %v2458
    %2741 = vmatprep.subr.bf16.mxu0 %v2455
    %2742 = vmatpush2.bf16.msra.mxu0 %v2454
    %2743 = vmatprep.subr.bf16.mxu0 %v2451
    %2744 = vmatpush2.bf16.msra.mxu0 %v2450
    %2745 = vmatprep.subr.bf16.mxu0 %v2447
    %2746 = vmatpush2.bf16.msra.mxu0 %v2446
    %2747 = vmatprep.subr.bf16.mxu0 %v2443
    %2748 = vmatpush2.bf16.msra.mxu0 %v2442
    %2749 = vmatprep.subr.bf16.mxu0 %v2439
    %2750 = vmatpush2.bf16.msra.mxu0 %v2438
    %2751 = vmatprep.mubr.bf16.mxu0 %v1811
    %2752 = vmatmul.mubr.bf16.gmra.mxu0 %v1810
    %v2753 = vpop.f32.mrf.mxu0
    %v2754 = vadd.f32 %v2713, %v2753
    %v2755 = vpop.f32.mrf.mxu0
    %v2756 = vadd.f32 %v2715, %v2755
    %v2757 = vpop.f32.mrf.mxu0
    %v2758 = vpop.f32.mrf.mxu0
    %2759 = vdwg.mxu0
    %2760 = vst [vmem:[#allocation11] sm:$0xff] %v2672
    %2761 = vst [vmem:[#allocation11 + $0x8] sm:$0xff] %v2674
    %2762 = vst [vmem:[#allocation11 + $0x10] sm:$0xff] %v2754
    %2763 = vst [vmem:[#allocation11 + $0x18] sm:$0xff] %v2756
    // Predicated region
    $region42: #{tpu_custom_call.1} parent=1 // pred_check
      _
    $region43: #{tpu_custom_call.1} parent=1 // pred_check_branch
      %2765 = sbr.rel (0) target = $region45
    $region44: #{tpu_custom_call.1} parent=1 // pred_region
      %s2767 = ssub.s32 512, 512
      %2768 = vsyncadd [#allocation4], %s2767
      %s2770 = sshll.u32 [#allocation11], 4
      %s2771 = int_to_ptr.vmem [resolvable:$true] %s2770
      %2773 = dma.vmem_to_hbm [thread:$0]  %s2771, 512, %s5, [#allocation4]
    $region45: #{tpu_custom_call.1} parent=1 // pred_fallthru
      _
    // Predicated region
    $region46: #{tpu_custom_call.1} parent=1 // pred_check
      _
    $region47: #{tpu_custom_call.1} parent=1 // pred_check_branch
      %2775 = sbr.rel (0) target = $region49
    $region48: #{tpu_custom_call.1} parent=1 // pred_region
      %2776 = dma.done [#allocation4], 512
    $region49: #{tpu_custom_call.1} parent=1 // pred_fallthru
      _
    %2777 = vsyncpa [#allocation3], 1
    %2778 = vsyncpa [#allocation6], 1
    %2779 = vsyncpa [#allocation9], 1
    %2780 = vsyncpa [#allocation4], 1

</llo_original>
